<compile_context>
chip_gen: v7x
topology: tpu7x:2x2x1
jax: 0.10.0
libtpu: 0.0.40
codegen_flags: <defaults>
</compile_context>

<pallas_src>
import functools
import math

import jax
import jax.numpy as jnp
from jax.experimental import pallas as pl
from jax.experimental.pallas import tpu as pltpu


def _attention_kernel(x_ref, wq_ref, bq_ref, wkv_ref, bkv_ref, wo_ref, bo_ref,
                      o_ref, *, block_q):
    # x_ref  : (1, S,  D) bf16   full sequence for this batch element
    # wq_ref : (D, D)  bf16      Wq^T, pre-scaled by 1/sqrt(D)
    # bq_ref : (1, D)  f32       bq, pre-scaled by 1/sqrt(D)
    # wkv_ref: (D, 2D) bf16      [Wk^T | Wv^T] fused
    # bkv_ref: (1, 2D) f32       [bk | bv]
    # wo_ref : (D, D)  bf16      Wo as stored by nn.Linear (out, in) — used NT
    # bo_ref : (D, 1)  f32       bo as a column (broadcast over the lane axis)
    # o_ref  : (1, D, TQ) f32    transposed, lane-dense output tile
    D = wo_ref.shape[0]
    S = x_ref.shape[1]

    x = x_ref[0]                                                         # (S, D) bf16
    if block_q == S:
        xq = x                                                           # single tile
    else:
        start = pl.multiple_of(pl.program_id(1) * block_q, block_q)
        xq = x_ref[0, pl.ds(start, block_q), :]                          # (TQ, D) bf16

    # Projections: bf16 MXU operands, f32 accumulation, f32 bias add.
    q = jnp.dot(xq, wq_ref[...],
                preferred_element_type=jnp.float32) + bq_ref[...]        # (TQ, D)
    kv = jnp.dot(x, wkv_ref[...],
                 preferred_element_type=jnp.float32) + bkv_ref[...]      # (S, 2D)
    k = kv[:, :D]
    v = kv[:, D:]

    # logits = (q / sqrt(D)) @ k^T  (scale already folded into Wq / bq).
    logits = jax.lax.dot_general(
        q.astype(jnp.bfloat16), k.astype(jnp.bfloat16),
        (((1,), (1,)), ((), ())),
        preferred_element_type=jnp.float32)                              # (TQ, S)

    # Stable softmax; normalization deferred until after the P@V matmul.
    m = jnp.max(logits, axis=-1, keepdims=True)
    p = jnp.exp(logits - m)                                              # (TQ, S) f32
    row_sum = jnp.sum(p, axis=-1, keepdims=True)                         # (TQ, 1)

    ctx = jnp.dot(p.astype(jnp.bfloat16), v.astype(jnp.bfloat16),
                  preferred_element_type=jnp.float32)                    # (TQ, D)
    ctx = ctx * pl.reciprocal(row_sum, approx=True)

    # out^T = Wo @ ctx^T + bo  -> (D, TQ); NT contraction, no explicit transpose.
    out_t = jax.lax.dot_general(
        wo_ref[...], ctx.astype(jnp.bfloat16),
        (((1,), (1,)), ((), ())),
        preferred_element_type=jnp.float32) + bo_ref[...]                # (D, TQ)

    o_ref[0] = out_t.astype(o_ref.dtype)


def attention_forward(x, params, *, block_q=None):
    """x: (b, ch, h, w) float32 NCHW; returns (b, ch, h, w) like the torch module."""
    b, ch, h, w = x.shape
    S = h * w
    D = ch
    scale = math.sqrt(D)

    # Query-tile size: a single tile for small/medium S (QKV projected once per
    # batch, minimal grid overhead); tile only when the (block_q, S) logits
    # would pressure VMEM.  Lane-dense output wants a multiple of 128.
    if block_q is None:
        block_q = S if S <= 1024 else 512
    block_q = min(block_q, S)
    if S % block_q != 0:
        block_q = S  # TODO(synk): ragged S would need masked query tiles.
    nq = S // block_q

    # PyTorch-identical raw reshape (row-major, no permute) to (b, S, D).
    xs = x.reshape(b, S, D).astype(jnp.bfloat16)

    # nn.Linear: y = x @ W.T + b (W stored as (out, in)).
    # Fold 1/sqrt(D) into the q projection; fuse K and V into one matmul.
    wq_s = (params["wq_w"].T / scale).astype(jnp.bfloat16)               # (D, D)
    bq_s = (params["wq_b"] / scale).reshape(1, D).astype(jnp.float32)
    wkv = jnp.concatenate([params["wk_w"].T, params["wv_w"].T],
                          axis=1).astype(jnp.bfloat16)                   # (D, 2D)
    bkv = jnp.concatenate([params["wk_b"], params["wv_b"]]
                          ).reshape(1, 2 * D).astype(jnp.float32)
    wo = params["wo_w"].astype(jnp.bfloat16)                             # (D, D), used NT
    bo = params["wo_b"].reshape(D, 1).astype(jnp.float32)                # column bias

    kernel = functools.partial(_attention_kernel, block_q=block_q)

    out_t = pl.pallas_call(
        kernel,
        out_shape=jax.ShapeDtypeStruct((b, D, S), x.dtype),
        grid_spec=pltpu.PrefetchScalarGridSpec(
            num_scalar_prefetch=0,
            grid=(b, nq),
            in_specs=[
                pl.BlockSpec((1, S, D), lambda i, j: (i, 0, 0)),         # x (full seq)
                pl.BlockSpec((D, D), lambda i, j: (0, 0)),               # Wq^T / sqrt(D)
                pl.BlockSpec((1, D), lambda i, j: (0, 0)),               # bq / sqrt(D)
                pl.BlockSpec((D, 2 * D), lambda i, j: (0, 0)),           # [Wk^T | Wv^T]
                pl.BlockSpec((1, 2 * D), lambda i, j: (0, 0)),           # [bk | bv]
                pl.BlockSpec((D, D), lambda i, j: (0, 0)),               # Wo (out, in)
                pl.BlockSpec((D, 1), lambda i, j: (0, 0)),               # bo column
            ],
            out_specs=pl.BlockSpec((1, D, block_q), lambda i, j: (i, 0, j)),
        ),
        compiler_params=pltpu.CompilerParams(
            dimension_semantics=("parallel", "parallel")),
    )(xs, wq_s, bq_s, wkv, bkv, wo, bo)

    # out_t is already (b, D, S) == out.transpose(-1, -2); only a free reshape left.
    return out_t.reshape(b, ch, h, w)


def _reference_forward(x, params):
    """Pure-JAX f32 reference mirroring the PyTorch forward, for verification."""
    b, ch, h, w = x.shape
    D = ch
    xs = x.reshape(b, h * w, ch)
    q = xs @ params["wq_w"].T + params["wq_b"]
    k = xs @ params["wk_w"].T + params["wk_b"]
    v = xs @ params["wv_w"].T + params["wv_b"]
    scale = math.sqrt(D)
    logits = jnp.einsum("bsd,btd->bst", q / scale, k)
    a = jax.nn.softmax(logits, axis=-1)
    out = jnp.einsum("bst,btd->bsd", a, v)
    out = out @ params["wo_w"].T + params["wo_b"]
    return jnp.transpose(out, (0, 2, 1)).reshape(b, ch, h, w)


def _init_params(key, D):
    """Deterministic init mimicking nn.Linear (uniform in [-1/sqrt(D), 1/sqrt(D)])."""
    bound = 1.0 / math.sqrt(D)
    keys = jax.random.split(key, 8)
    names = ["wq", "wk", "wv", "wo"]
    params = {}
    for i, n in enumerate(names):
        params[f"{n}_w"] = jax.random.uniform(
            keys[2 * i], (D, D), jnp.float32, -bound, bound)
        params[f"{n}_b"] = jax.random.uniform(
            keys[2 * i + 1], (D,), jnp.float32, -bound, bound)
    return params


if __name__ == "__main__":
    key = jax.random.PRNGKey(0)
    k_x, k_p = jax.random.split(key)

    b, ch, h, w = 2, 4, 16, 16          # D == ch == 4, S == 256
    x = jax.random.normal(k_x, (b, ch, h, w), jnp.float32)
    params = _init_params(k_p, ch)

    ref = _reference_forward(x, params)

    # Default path: single query tile per batch (block_q == S).
    out = jax.block_until_ready(attention_forward(x, params))
    assert out.shape == (b, ch, h, w)
    max_err = float(jnp.max(jnp.abs(out - ref)))
    # bf16 MXU operands + approximate reciprocal -> bf16-level tolerance vs f32 ref.
    assert jnp.allclose(out, ref, atol=2e-2, rtol=2e-2), (
        f"mismatch vs reference (max |err| = {max_err})")

    # Tiled path: exercise the in-kernel query-tile slice (nq > 1).
    out_tiled = jax.block_until_ready(attention_forward(x, params, block_q=128))
    max_err_t = float(jnp.max(jnp.abs(out_tiled - ref)))
    assert jnp.allclose(out_tiled, ref, atol=2e-2, rtol=2e-2), (
        f"tiled mismatch vs reference (max |err| = {max_err_t})")

    print("KERNEL_OK")
</pallas_src>

<mosaic_0001>
module attributes {stable_mosaic.version = 11 : i64} {
  func.func @_attention_kernel(%arg0: i32, %arg1: i32, %arg2: memref<1x256x4xbf16, #tpu.memory_space<vmem>>, %arg3: memref<4x4xbf16, #tpu.memory_space<vmem>>, %arg4: memref<1x4xf32, #tpu.memory_space<vmem>>, %arg5: memref<4x8xbf16, #tpu.memory_space<vmem>>, %arg6: memref<1x8xf32, #tpu.memory_space<vmem>>, %arg7: memref<4x4xbf16, #tpu.memory_space<vmem>>, %arg8: memref<4x1xf32, #tpu.memory_space<vmem>>, %arg9: memref<1x4x256xf32, #tpu.memory_space<vmem>>) attributes {dimension_semantics = [#tpu.dimension_semantics<parallel>, #tpu.dimension_semantics<parallel>], iteration_bounds = array<i64: 2, 1>, scalar_prefetch = 0 : i64, scratch_operands = 0 : i64, tpu.core_type = #tpu.core_type<tc>, window_params = [{transform_indices = @transform_0, window_bounds = array<i64: 1, 256, 4>}, {pipeline_mode = #tpu.pipeline_mode<synchronous>, transform_indices = @transform_1, window_bounds = array<i64: 4, 4>}, {pipeline_mode = #tpu.pipeline_mode<synchronous>, transform_indices = @transform_2, window_bounds = array<i64: 1, 4>}, {pipeline_mode = #tpu.pipeline_mode<synchronous>, transform_indices = @transform_3, window_bounds = array<i64: 4, 8>}, {pipeline_mode = #tpu.pipeline_mode<synchronous>, transform_indices = @transform_4, window_bounds = array<i64: 1, 8>}, {pipeline_mode = #tpu.pipeline_mode<synchronous>, transform_indices = @transform_5, window_bounds = array<i64: 4, 4>}, {pipeline_mode = #tpu.pipeline_mode<synchronous>, transform_indices = @transform_6, window_bounds = array<i64: 4, 1>}, {transform_indices = @transform_7, window_bounds = array<i64: 1, 4, 256>}]} {
    %c0 = arith.constant 0 : index
    %c0_0 = arith.constant 0 : index
    %c0_1 = arith.constant 0 : index
    %0 = vector.load %arg2[%c0, %c0_0, %c0_1] : memref<1x256x4xbf16, #tpu.memory_space<vmem>>, vector<1x256x4xbf16>
    %1 = vector.shape_cast %0 : vector<1x256x4xbf16> to vector<256x4xbf16>
    %c0_2 = arith.constant 0 : index
    %c0_3 = arith.constant 0 : index
    %2 = vector.load %arg3[%c0_2, %c0_3] : memref<4x4xbf16, #tpu.memory_space<vmem>>, vector<4x4xbf16>
    %cst = arith.constant dense<0.000000e+00> : vector<256x4xf32>
    %3 = tpu.matmul %1, %2, %cst {dimension_numbers = #tpu.dot_dimension_numbers<[1], [0], [0], [1], [0, 0, 1, 1], [], []>} : vector<256x4xbf16>, vector<4x4xbf16>, vector<256x4xf32> -> vector<256x4xf32>
    %c0_4 = arith.constant 0 : index
    %c0_5 = arith.constant 0 : index
    %4 = vector.load %arg4[%c0_4, %c0_5] : memref<1x4xf32, #tpu.memory_space<vmem>>, vector<1x4xf32>
    %5 = vector.broadcast %4 : vector<1x4xf32> to vector<256x4xf32>
    %6 = arith.addf %3, %5 : vector<256x4xf32>
    %c0_6 = arith.constant 0 : index
    %c0_7 = arith.constant 0 : index
    %7 = vector.load %arg5[%c0_6, %c0_7] : memref<4x8xbf16, #tpu.memory_space<vmem>>, vector<4x8xbf16>
    %cst_8 = arith.constant dense<0.000000e+00> : vector<256x8xf32>
    %8 = tpu.matmul %1, %7, %cst_8 {dimension_numbers = #tpu.dot_dimension_numbers<[1], [0], [0], [1], [0, 0, 1, 1], [], []>} : vector<256x4xbf16>, vector<4x8xbf16>, vector<256x8xf32> -> vector<256x8xf32>
    %c0_9 = arith.constant 0 : index
    %c0_10 = arith.constant 0 : index
    %9 = vector.load %arg6[%c0_9, %c0_10] : memref<1x8xf32, #tpu.memory_space<vmem>>, vector<1x8xf32>
    %10 = vector.broadcast %9 : vector<1x8xf32> to vector<256x8xf32>
    %11 = arith.addf %8, %10 : vector<256x8xf32>
    %12 = vector.extract_strided_slice %11 {offsets = [0, 0], sizes = [256, 4], strides = [1, 1]} : vector<256x8xf32> to vector<256x4xf32>
    %13 = vector.extract_strided_slice %11 {offsets = [0, 4], sizes = [256, 4], strides = [1, 1]} : vector<256x8xf32> to vector<256x4xf32>
    %14 = arith.truncf %6 : vector<256x4xf32> to vector<256x4xbf16>
    %15 = arith.truncf %12 : vector<256x4xf32> to vector<256x4xbf16>
    %cst_11 = arith.constant dense<0.000000e+00> : vector<256x256xf32>
    %16 = tpu.matmul %14, %15, %cst_11 {dimension_numbers = #tpu.dot_dimension_numbers<[1], [1], [0], [0], [0, 0, 1, 0], [], []>} : vector<256x4xbf16>, vector<256x4xbf16>, vector<256x256xf32> -> vector<256x256xf32>
    %cst_12 = arith.constant dense<0xFF800000> : vector<256xf32>
    %17 = vector.multi_reduction <maximumf>, %16, %cst_12 [1] : vector<256x256xf32> to vector<256xf32>
    %18 = vector.shape_cast %17 : vector<256xf32> to vector<256x1xf32>
    %19 = vector.broadcast %18 : vector<256x1xf32> to vector<256x256xf32>
    %20 = arith.subf %16, %19 : vector<256x256xf32>
    %21 = math.exp %20 : vector<256x256xf32>
    %cst_13 = arith.constant dense<0.000000e+00> : vector<256xf32>
    %22 = vector.multi_reduction <add>, %21, %cst_13 [1] : vector<256x256xf32> to vector<256xf32>
    %23 = vector.shape_cast %22 : vector<256xf32> to vector<256x1xf32>
    %24 = arith.truncf %21 : vector<256x256xf32> to vector<256x256xbf16>
    %25 = arith.truncf %13 : vector<256x4xf32> to vector<256x4xbf16>
    %cst_14 = arith.constant dense<0.000000e+00> : vector<256x4xf32>
    %26 = tpu.matmul %24, %25, %cst_14 {dimension_numbers = #tpu.dot_dimension_numbers<[1], [0], [0], [1], [0, 0, 1, 1], [], []>} : vector<256x256xbf16>, vector<256x4xbf16>, vector<256x4xf32> -> vector<256x4xf32>
    %27 = tpu.reciprocal %23 {approx = true} : vector<256x1xf32> -> vector<256x1xf32>
    %28 = vector.broadcast %27 : vector<256x1xf32> to vector<256x4xf32>
    %29 = arith.mulf %26, %28 : vector<256x4xf32>
    %c0_15 = arith.constant 0 : index
    %c0_16 = arith.constant 0 : index
    %30 = vector.load %arg7[%c0_15, %c0_16] : memref<4x4xbf16, #tpu.memory_space<vmem>>, vector<4x4xbf16>
    %31 = arith.truncf %29 : vector<256x4xf32> to vector<256x4xbf16>
    %cst_17 = arith.constant dense<0.000000e+00> : vector<4x256xf32>
    %32 = tpu.matmul %30, %31, %cst_17 {dimension_numbers = #tpu.dot_dimension_numbers<[1], [1], [0], [0], [0, 0, 1, 0], [], []>} : vector<4x4xbf16>, vector<256x4xbf16>, vector<4x256xf32> -> vector<4x256xf32>
    %c0_18 = arith.constant 0 : index
    %c0_19 = arith.constant 0 : index
    %33 = vector.load %arg8[%c0_18, %c0_19] : memref<4x1xf32, #tpu.memory_space<vmem>>, vector<4x1xf32>
    %34 = vector.broadcast %33 : vector<4x1xf32> to vector<4x256xf32>
    %35 = arith.addf %32, %34 : vector<4x256xf32>
    %c0_20 = arith.constant 0 : index
    %c0_21 = arith.constant 0 : index
    %c0_22 = arith.constant 0 : index
    %36 = vector.load %arg9[%c0_20, %c0_21, %c0_22] : memref<1x4x256xf32, #tpu.memory_space<vmem>>, vector<1x4x256xf32>
    %37 = vector.shape_cast %36 : vector<1x4x256xf32> to vector<4x256xf32>
    %38 = vector.shape_cast %35 : vector<4x256xf32> to vector<1x4x256xf32>
    tpu.vector_store %arg9[%c0_20, %c0_21, %c0_22], %38 {strides = array<i32>} : memref<1x4x256xf32, #tpu.memory_space<vmem>>, vector<1x4x256xf32>,
    return
  }
  func.func @transform_0(%arg0: i32, %arg1: i32) -> (i32, i32, i32) {
    %c0_i32 = arith.constant 0 : i32
    %c0_i32_0 = arith.constant 0 : i32
    %c0_i32_1 = arith.constant 0 : i32
    return %arg0, %c0_i32, %c0_i32_0 : i32, i32, i32
  }
  func.func @transform_1(%arg0: i32, %arg1: i32) -> (i32, i32) {
    %c0_i32 = arith.constant 0 : i32
    %c0_i32_0 = arith.constant 0 : i32
    %c0_i32_1 = arith.constant 0 : i32
    return %c0_i32, %c0_i32_0 : i32, i32
  }
  func.func @transform_2(%arg0: i32, %arg1: i32) -> (i32, i32) {
    %c0_i32 = arith.constant 0 : i32
    %c0_i32_0 = arith.constant 0 : i32
    %c0_i32_1 = arith.constant 0 : i32
    return %c0_i32, %c0_i32_0 : i32, i32
  }
  func.func @transform_3(%arg0: i32, %arg1: i32) -> (i32, i32) {
    %c0_i32 = arith.constant 0 : i32
    %c0_i32_0 = arith.constant 0 : i32
    %c0_i32_1 = arith.constant 0 : i32
    return %c0_i32, %c0_i32_0 : i32, i32
  }
  func.func @transform_4(%arg0: i32, %arg1: i32) -> (i32, i32) {
    %c0_i32 = arith.constant 0 : i32
    %c0_i32_0 = arith.constant 0 : i32
    %c0_i32_1 = arith.constant 0 : i32
    return %c0_i32, %c0_i32_0 : i32, i32
  }
  func.func @transform_5(%arg0: i32, %arg1: i32) -> (i32, i32) {
    %c0_i32 = arith.constant 0 : i32
    %c0_i32_0 = arith.constant 0 : i32
    %c0_i32_1 = arith.constant 0 : i32
    return %c0_i32, %c0_i32_0 : i32, i32
  }
  func.func @transform_6(%arg0: i32, %arg1: i32) -> (i32, i32) {
    %c0_i32 = arith.constant 0 : i32
    %c0_i32_0 = arith.constant 0 : i32
    %c0_i32_1 = arith.constant 0 : i32
    return %c0_i32, %c0_i32_0 : i32, i32
  }
  func.func @transform_7(%arg0: i32, %arg1: i32) -> (i32, i32, i32) {
    %c0_i32 = arith.constant 0 : i32
    %c0_i32_0 = arith.constant 0 : i32
    return %arg0, %c0_i32, %arg1 : i32, i32, i32
  }
}

</mosaic_0001>

<llo_original>
// kernel: tpu_custom_call.1
$region0: #{tpu_custom_call.1}
  #allocation0 [shape = 'u32[]', space=smem, size = 0x4, offset = 0x4, fixed_abs, tag = 'smem constant byte address 0x4 - core index']
  #allocation1 [shape = 'u32[144,128]{1,0:T(1,128)}', space=vmem, size = 0x12000, scoped, tag = 'internal scratch']
  %s0 = inlined_call_operand.vmem [shape: bf16[2,256,4], index: 0, kind: input, shape index: {}]
  %s1 = inlined_call_operand.vmem [shape: bf16[4,4], index: 1, kind: input, shape index: {}]
  %s2 = inlined_call_operand.vmem [shape: f32[1,4], index: 2, kind: input, shape index: {}]
  %s3 = inlined_call_operand.vmem [shape: bf16[4,8], index: 3, kind: input, shape index: {}]
  %s4 = inlined_call_operand.vmem [shape: f32[1,8], index: 4, kind: input, shape index: {}]
  %s5 = inlined_call_operand.vmem [shape: bf16[4,4], index: 5, kind: input, shape index: {}]
  %s6 = inlined_call_operand.vmem [shape: f32[4,1], index: 6, kind: input, shape index: {}]
  %s7 = inlined_call_operand.hbm [shape: f32[2,4,256], index: 7, kind: output, shape index: {}]
  %s8 = sld [smem:[#allocation0]]
  $region61: #{tpu_custom_call.1} parent=0
    _
  %s10 = ssub.s32 1, %s8
  %s11 = scalar_select 0, %s10, %s8
  $region1: #{tpu_custom_call.1} parent=0
    #allocation2 [shape = 'u8[8192]{0}', space=vmem, size = 0x2000, scoped, tag = 'output window, operand 0']
    #allocation3 [shape = 's32[2]{0}', space=sflag, size = 0x8, scoped, tag = 'scoped memory for tpu_custom_call.1']
    %12 = vsyncpa [#allocation3], 0
    %s13 = scalar_lea.sflag [#allocation3], 1
    %14 = vsyncpa %s13, 0
    loop: start=0, step=1, limit=4
    $region2: #{tpu_custom_call.1} parent=1 // loop_pre_header
      _
    $region3: #{tpu_custom_call.1} parent=1 // loop_header
      %s16 = sphi 0, %s20
      %p17 = scmp.ge.s32.totalorder %s16, 4
      %s23 = sphi 0, %s35
      %s24 = sphi 0, %s31
      %s25 = sphi 0, %s23
      %s26 = sphi 0, %s24
      %s27 = sphi 0, %s25
      %s28 = sphi 0, %s26
      %s38 = sphi 0, %s40
      %s41 = sphi 0, %s38
      %s42 = sphi 0, %s41
      %s58 = sphi 0, %s42
      %s62 = sphi 0, %s62
      %s64 = sphi 0, %s62
      %s65 = sphi 0, %s64
      %s79 = sphi 0, %s65
      %s83 = sphi 0, %s83
      %s85 = sphi 0, %s83
      %s86 = sphi 0, %s85
      %s100 = sphi 0, %s86
      %s104 = sphi 0, %s104
      %s106 = sphi 0, %s104
      %s107 = sphi 0, %s106
      %s121 = sphi 0, %s107
      %s125 = sphi 0, %s125
      %s127 = sphi 0, %s125
      %s128 = sphi 0, %s127
      %s142 = sphi 0, %s128
      %s146 = sphi 0, %s146
      %s148 = sphi 0, %s146
      %s149 = sphi 0, %s148
      %s163 = sphi 0, %s149
      %s167 = sphi 0, %s167
      %s169 = sphi 0, %s167
      %s170 = sphi 0, %s169
      %s184 = sphi 0, %s170
      %s192 = sphi 0, %s194
      %s195 = sphi 0, %s192
      %s196 = sphi 0, %s195
      %s212 = sphi 0, %s196
    $region4: #{tpu_custom_call.1} parent=1 // loop_header_branch
      %19 = sbr.rel (%p17) target = $region8
    $region5: #{tpu_custom_call.1} parent=1 // loop_body
      %s21 = ssub.s32 %s16, 1
      %s22 = ssub.s32 %s16, 2
      %s29 = sadd.s32 1, %s24
      %p30 = scmp.ge.s32.totalorder %s29, 1
      %s31 = scalar_select %p30, 0, %s29
      %s32 = sadd.s32 1, %s23
      %s33 = scalar_select %p30, %s32, %s23
      %p34 = scmp.ge.s32.totalorder %s33, 2
      %s35 = scalar_select %p34, 0, %s33
      %s36 = ssub.s32 %s23, %s35
      %p37 = scmp.eq.s32.totalorder %s36, 0
      %s39 = sadd.s32 %s38, 1
      %s40 = scalar_select %p37, %s38, %s39
      %p43 = pneg %p37
      %p44 = scmp.eq.s32.totalorder %s16, 1
      %p45 = por %p43, %p44
      %p46 = scmp.ne.s32.totalorder %s38, %s41
      %p47 = scmp.eq.s32.totalorder %s16, 0
      %p48 = por %p46, %p47
      %p49 = scmp.ne.s32.totalorder %s38, %s41
      %p50 = scmp.eq.s32.totalorder %s21, 1
      %p51 = por %p49, %p50
      %p52 = scmp.ne.s32.totalorder %s41, %s42
      %p53 = scmp.eq.s32.totalorder %s21, 0
      %p54 = por %p52, %p53
      %p55 = scmp.ne.s32.totalorder %s41, %s42
      %p56 = scmp.eq.s32.totalorder %s22, 1
      %p57 = por %p55, %p56
      %p59 = scmp.ne.s32.totalorder %s42, %s58
      %p60 = scmp.eq.s32.totalorder %s22, 0
      %p61 = por %p59, %p60
      %s63 = sadd.s32 %s62, 1
      %p66 = scmp.eq.s32.totalorder %s16, 1
      %p67 = scmp.ne.s32.totalorder %s62, %s64
      %p68 = scmp.eq.s32.totalorder %s16, 0
      %p69 = por %p67, %p68
      %p70 = scmp.ne.s32.totalorder %s62, %s64
      %p71 = scmp.eq.s32.totalorder %s21, 1
      %p72 = por %p70, %p71
      %p73 = scmp.ne.s32.totalorder %s64, %s65
      %p74 = scmp.eq.s32.totalorder %s21, 0
      %p75 = por %p73, %p74
      %p76 = scmp.ne.s32.totalorder %s64, %s65
      %p77 = scmp.eq.s32.totalorder %s22, 1
      %p78 = por %p76, %p77
      %p80 = scmp.ne.s32.totalorder %s65, %s79
      %p81 = scmp.eq.s32.totalorder %s22, 0
      %p82 = por %p80, %p81
      %s84 = sadd.s32 %s83, 1
      %p87 = scmp.eq.s32.totalorder %s16, 1
      %p88 = scmp.ne.s32.totalorder %s83, %s85
      %p89 = scmp.eq.s32.totalorder %s16, 0
      %p90 = por %p88, %p89
      %p91 = scmp.ne.s32.totalorder %s83, %s85
      %p92 = scmp.eq.s32.totalorder %s21, 1
      %p93 = por %p91, %p92
      %p94 = scmp.ne.s32.totalorder %s85, %s86
      %p95 = scmp.eq.s32.totalorder %s21, 0
      %p96 = por %p94, %p95
      %p97 = scmp.ne.s32.totalorder %s85, %s86
      %p98 = scmp.eq.s32.totalorder %s22, 1
      %p99 = por %p97, %p98
      %p101 = scmp.ne.s32.totalorder %s86, %s100
      %p102 = scmp.eq.s32.totalorder %s22, 0
      %p103 = por %p101, %p102
      %s105 = sadd.s32 %s104, 1
      %p108 = scmp.eq.s32.totalorder %s16, 1
      %p109 = scmp.ne.s32.totalorder %s104, %s106
      %p110 = scmp.eq.s32.totalorder %s16, 0
      %p111 = por %p109, %p110
      %p112 = scmp.ne.s32.totalorder %s104, %s106
      %p113 = scmp.eq.s32.totalorder %s21, 1
      %p114 = por %p112, %p113
      %p115 = scmp.ne.s32.totalorder %s106, %s107
      %p116 = scmp.eq.s32.totalorder %s21, 0
      %p117 = por %p115, %p116
      %p118 = scmp.ne.s32.totalorder %s106, %s107
      %p119 = scmp.eq.s32.totalorder %s22, 1
      %p120 = por %p118, %p119
      %p122 = scmp.ne.s32.totalorder %s107, %s121
      %p123 = scmp.eq.s32.totalorder %s22, 0
      %p124 = por %p122, %p123
      %s126 = sadd.s32 %s125, 1
      %p129 = scmp.eq.s32.totalorder %s16, 1
      %p130 = scmp.ne.s32.totalorder %s125, %s127
      %p131 = scmp.eq.s32.totalorder %s16, 0
      %p132 = por %p130, %p131
      %p133 = scmp.ne.s32.totalorder %s125, %s127
      %p134 = scmp.eq.s32.totalorder %s21, 1
      %p135 = por %p133, %p134
      %p136 = scmp.ne.s32.totalorder %s127, %s128
      %p137 = scmp.eq.s32.totalorder %s21, 0
      %p138 = por %p136, %p137
      %p139 = scmp.ne.s32.totalorder %s127, %s128
      %p140 = scmp.eq.s32.totalorder %s22, 1
      %p141 = por %p139, %p140
      %p143 = scmp.ne.s32.totalorder %s128, %s142
      %p144 = scmp.eq.s32.totalorder %s22, 0
      %p145 = por %p143, %p144
      %s147 = sadd.s32 %s146, 1
      %p150 = scmp.eq.s32.totalorder %s16, 1
      %p151 = scmp.ne.s32.totalorder %s146, %s148
      %p152 = scmp.eq.s32.totalorder %s16, 0
      %p153 = por %p151, %p152
      %p154 = scmp.ne.s32.totalorder %s146, %s148
      %p155 = scmp.eq.s32.totalorder %s21, 1
      %p156 = por %p154, %p155
      %p157 = scmp.ne.s32.totalorder %s148, %s149
      %p158 = scmp.eq.s32.totalorder %s21, 0
      %p159 = por %p157, %p158
      %p160 = scmp.ne.s32.totalorder %s148, %s149
      %p161 = scmp.eq.s32.totalorder %s22, 1
      %p162 = por %p160, %p161
      %p164 = scmp.ne.s32.totalorder %s149, %s163
      %p165 = scmp.eq.s32.totalorder %s22, 0
      %p166 = por %p164, %p165
      %s168 = sadd.s32 %s167, 1
      %p171 = scmp.eq.s32.totalorder %s16, 1
      %p172 = scmp.ne.s32.totalorder %s167, %s169
      %p173 = scmp.eq.s32.totalorder %s16, 0
      %p174 = por %p172, %p173
      %p175 = scmp.ne.s32.totalorder %s167, %s169
      %p176 = scmp.eq.s32.totalorder %s21, 1
      %p177 = por %p175, %p176
      %p178 = scmp.ne.s32.totalorder %s169, %s170
      %p179 = scmp.eq.s32.totalorder %s21, 0
      %p180 = por %p178, %p179
      %p181 = scmp.ne.s32.totalorder %s169, %s170
      %p182 = scmp.eq.s32.totalorder %s22, 1
      %p183 = por %p181, %p182
      %p185 = scmp.ne.s32.totalorder %s170, %s184
      %p186 = scmp.eq.s32.totalorder %s22, 0
      %p187 = por %p185, %p186
      %s188 = ssub.s32 %s23, %s35
      %s189 = ssub.s32 %s24, %s31
      %s190 = sor.u32 %s188, %s189
      %p191 = scmp.eq.s32.totalorder %s190, 0
      %s193 = sadd.s32 %s192, 1
      %s194 = scalar_select %p191, %s192, %s193
      %p197 = pneg %p191
      %p198 = scmp.eq.s32.totalorder %s16, 1
      %p199 = por %p197, %p198
      %p200 = scmp.ne.s32.totalorder %s192, %s195
      %p201 = scmp.eq.s32.totalorder %s16, 0
      %p202 = por %p200, %p201
      %p203 = scmp.ne.s32.totalorder %s192, %s195
      %p204 = scmp.eq.s32.totalorder %s21, 1
      %p205 = por %p203, %p204
      %p206 = scmp.ne.s32.totalorder %s195, %s196
      %p207 = scmp.eq.s32.totalorder %s21, 0
      %p208 = por %p206, %p207
      %p209 = scmp.ne.s32.totalorder %s195, %s196
      %p210 = scmp.eq.s32.totalorder %s22, 1
      %p211 = por %p209, %p210
      %p213 = scmp.ne.s32.totalorder %s196, %s212
      %p214 = scmp.eq.s32.totalorder %s22, 0
      %p215 = por %p213, %p214
      %p216 = scmp.le.s32.totalorder 1, %s16
      %p217 = scmp.lt.s32.totalorder %s16, 3
      %p218 = pnand %p216, %p217
      %p219 = pneg %p218
      // Predicated region
      $region9: #{tpu_custom_call.1} parent=5 // pred_check
        _
      $region10: #{tpu_custom_call.1} parent=5 // pred_check_branch
        %221 = sbr.rel (%p218) target = $region12
      $region11: #{tpu_custom_call.1} parent=5 // pred_region
        %s222 = ssub.s32 %s16, 1
        // Predicated region
        $region13: #{tpu_custom_call.1} parent=11 // pred_check
          %p223 = pneg %p75
        $region14: #{tpu_custom_call.1} parent=11 // pred_check_branch
          %225 = sbr.rel (%p223) target = $region16
        $region15: #{tpu_custom_call.1} parent=11 // pred_region
          _
        $region16: #{tpu_custom_call.1} parent=11 // pred_fallthru
          _
        // Predicated region
        $region17: #{tpu_custom_call.1} parent=11 // pred_check
          %p226 = pneg %p96
        $region18: #{tpu_custom_call.1} parent=11 // pred_check_branch
          %228 = sbr.rel (%p226) target = $region20
        $region19: #{tpu_custom_call.1} parent=11 // pred_region
          _
        $region20: #{tpu_custom_call.1} parent=11 // pred_fallthru
          _
        // Predicated region
        $region21: #{tpu_custom_call.1} parent=11 // pred_check
          %p229 = pneg %p117
        $region22: #{tpu_custom_call.1} parent=11 // pred_check_branch
          %231 = sbr.rel (%p229) target = $region24
        $region23: #{tpu_custom_call.1} parent=11 // pred_region
          _
        $region24: #{tpu_custom_call.1} parent=11 // pred_fallthru
          _
        // Predicated region
        $region25: #{tpu_custom_call.1} parent=11 // pred_check
          %p232 = pneg %p138
        $region26: #{tpu_custom_call.1} parent=11 // pred_check_branch
          %234 = sbr.rel (%p232) target = $region28
        $region27: #{tpu_custom_call.1} parent=11 // pred_region
          _
        $region28: #{tpu_custom_call.1} parent=11 // pred_fallthru
          _
        // Predicated region
        $region29: #{tpu_custom_call.1} parent=11 // pred_check
          %p235 = pneg %p159
        $region30: #{tpu_custom_call.1} parent=11 // pred_check_branch
          %237 = sbr.rel (%p235) target = $region32
        $region31: #{tpu_custom_call.1} parent=11 // pred_region
          _
        $region32: #{tpu_custom_call.1} parent=11 // pred_fallthru
          _
        // Predicated region
        $region33: #{tpu_custom_call.1} parent=11 // pred_check
          %p238 = pneg %p180
        $region34: #{tpu_custom_call.1} parent=11 // pred_check_branch
          %240 = sbr.rel (%p238) target = $region36
        $region35: #{tpu_custom_call.1} parent=11 // pred_region
          _
        $region36: #{tpu_custom_call.1} parent=11 // pred_fallthru
          _
      $region12: #{tpu_custom_call.1} parent=5 // pred_fallthru
        _
      %p241 = scmp.lt.s32.totalorder %s16, 2
      // Predicated region
      $region37: #{tpu_custom_call.1} parent=5 // pred_check
        %p242 = pneg %p241
      $region38: #{tpu_custom_call.1} parent=5 // pred_check_branch
        %244 = sbr.rel (%p242) target = $region40
      $region39: #{tpu_custom_call.1} parent=5 // pred_region
        // Predicated region
        $region41: #{tpu_custom_call.1} parent=39 // pred_check
          %p245 = pneg %p48
        $region42: #{tpu_custom_call.1} parent=39 // pred_check_branch
          %247 = sbr.rel (%p245) target = $region44
        $region43: #{tpu_custom_call.1} parent=39 // pred_region
          %p248 = scmp.lt.s32.totalorder %s23, 1
          %s249 = scalar_select %p248, %s23, 1
          %s250 = smul.addr %s249, 32
          %s251 = smul.addr %s250, 4
          %s252 = scalar_lea.vmem %s0, %s251
        $region44: #{tpu_custom_call.1} parent=39 // pred_fallthru
          _
      $region40: #{tpu_custom_call.1} parent=5 // pred_fallthru
        _
      %p253 = scmp.le.s32.totalorder 1, %s16
      %p254 = scmp.lt.s32.totalorder %s16, 3
      %p255 = pnand %p253, %p254
      %p256 = pneg %p255
      // Predicated region
      $region45: #{tpu_custom_call.1} parent=5 // pred_check
        _
      $region46: #{tpu_custom_call.1} parent=5 // pred_check_branch
        %258 = sbr.rel (%p255) target = $region48
      $region47: #{tpu_custom_call.1} parent=5 // pred_region
        %s259 = ssub.s32 %s16, 1
        %p260 = scmp.lt.s32.totalorder %s25, 1
        %s261 = scalar_select %p260, %s25, 1
        %s262 = smul.addr %s261, 32
        %s263 = smul.addr %s262, 4
        %s264 = scalar_lea.vmem %s0, %s263
        %p265 = pneg %p54
        %p266 = pneg %p51
        %p267 = pneg %p75
        %p268 = pneg %p72
        %p269 = pneg %p96
        %p270 = pneg %p93
        %p271 = pneg %p117
        %p272 = pneg %p114
        %p273 = pneg %p138
        %p274 = pneg %p135
        %p275 = pneg %p159
        %p276 = pneg %p156
        %p277 = pneg %p180
        %p278 = pneg %p177
        %p279 = pneg %p208
        %p280 = pneg %p205
        %s281 = sand.u32 %s195, 1
        %s282 = scalar_lea.sflag [#allocation3], %s281
        %s283 = sand.u32 %s195, 1
        %s284 = smul.addr %s283, 8
        %s285 = scalar_lea.vmem [#allocation2], %s284
        %p286 = scmp.lt.s32.totalorder %s25, 1
        %s287 = scalar_select %p286, %s25, 1
        %s288 = smul.addr %s287, 32
        %s289 = smul.addr %s288, 4
        %s290 = scalar_lea.vmem %s0, %s289
        %s291 = smul.u32 2, %s26
        %v293 = vld [vmem:[%s290] sm:$0xf]
        %v294 = vld [vmem:[%s290 + $0x4] sm:$0xf]
        %v295 = vld [vmem:[%s290 + $0x8] sm:$0xf]
        %v296 = vld [vmem:[%s290 + $0xc] sm:$0xf]
        %v297 = vld [vmem:[%s290 + $0x10] sm:$0xf]
        %v298 = vld [vmem:[%s290 + $0x14] sm:$0xf]
        %v299 = vld [vmem:[%s290 + $0x18] sm:$0xf]
        %v300 = vld [vmem:[%s290 + $0x1c] sm:$0xf]
        %v301 = vld [vmem:[%s290 + $0x20] sm:$0xf]
        %v302 = vld [vmem:[%s290 + $0x24] sm:$0xf]
        %v303 = vld [vmem:[%s290 + $0x28] sm:$0xf]
        %v304 = vld [vmem:[%s290 + $0x2c] sm:$0xf]
        %v305 = vld [vmem:[%s290 + $0x30] sm:$0xf]
        %v306 = vld [vmem:[%s290 + $0x34] sm:$0xf]
        %v307 = vld [vmem:[%s290 + $0x38] sm:$0xf]
        %v308 = vld [vmem:[%s290 + $0x3c] sm:$0xf]
        %v309 = vld [vmem:[%s290 + $0x40] sm:$0xf]
        %v310 = vld [vmem:[%s290 + $0x44] sm:$0xf]
        %v311 = vld [vmem:[%s290 + $0x48] sm:$0xf]
        %v312 = vld [vmem:[%s290 + $0x4c] sm:$0xf]
        %v313 = vld [vmem:[%s290 + $0x50] sm:$0xf]
        %v314 = vld [vmem:[%s290 + $0x54] sm:$0xf]
        %v315 = vld [vmem:[%s290 + $0x58] sm:$0xf]
        %v316 = vld [vmem:[%s290 + $0x5c] sm:$0xf]
        %v317 = vld [vmem:[%s290 + $0x60] sm:$0xf]
        %v318 = vld [vmem:[%s290 + $0x64] sm:$0xf]
        %v319 = vld [vmem:[%s290 + $0x68] sm:$0xf]
        %v320 = vld [vmem:[%s290 + $0x6c] sm:$0xf]
        %v321 = vld [vmem:[%s290 + $0x70] sm:$0xf]
        %v322 = vld [vmem:[%s290 + $0x74] sm:$0xf]
        %v323 = vld [vmem:[%s290 + $0x78] sm:$0xf]
        %v324 = vld [vmem:[%s290 + $0x7c] sm:$0xf]
        %v325 = vld [vmem:[%s1] sm:$0x3]
        %v326 = vld [vmem:[%s2] sm:$0x1]
        %v328 = vlaneseq
        %v329 = vshrl.u32 %v328, 7
        %v330 = vsub.s32 0, %v329
        %v331 = vrot.slane %v326, %v330
        %v365 = vunpack.c.l.b16 %v293
        %v366 = vunpack.c.l.b16 %v294
        %v367 = vunpack.c.l.b16 %v295
        %v368 = vunpack.c.l.b16 %v296
        %v369 = vunpack.c.l.b16 %v297
        %v370 = vunpack.c.l.b16 %v298
        %v371 = vunpack.c.l.b16 %v299
        %v372 = vunpack.c.l.b16 %v300
        %v373 = vunpack.c.l.b16 %v301
        %v374 = vunpack.c.l.b16 %v302
        %v375 = vunpack.c.l.b16 %v303
        %v376 = vunpack.c.l.b16 %v304
        %v377 = vunpack.c.l.b16 %v305
        %v378 = vunpack.c.l.b16 %v306
        %v379 = vunpack.c.l.b16 %v307
        %v380 = vunpack.c.l.b16 %v308
        %v381 = vunpack.c.l.b16 %v309
        %v382 = vunpack.c.l.b16 %v310
        %v383 = vunpack.c.l.b16 %v311
        %v384 = vunpack.c.l.b16 %v312
        %v385 = vunpack.c.l.b16 %v313
        %v386 = vunpack.c.l.b16 %v314
        %v387 = vunpack.c.l.b16 %v315
        %v388 = vunpack.c.l.b16 %v316
        %v389 = vunpack.c.l.b16 %v317
        %v390 = vunpack.c.l.b16 %v318
        %v391 = vunpack.c.l.b16 %v319
        %v392 = vunpack.c.l.b16 %v320
        %v393 = vunpack.c.l.b16 %v321
        %v394 = vunpack.c.l.b16 %v322
        %v395 = vunpack.c.l.b16 %v323
        %v396 = vunpack.c.l.b16 %v324
        %v397 = vpack.c.b16 %v366, %v365
        %v398 = vpack.c.b16 %v368, %v367
        %v399 = vpack.c.b16 %v370, %v369
        %v400 = vpack.c.b16 %v372, %v371
        %v401 = vpack.c.b16 %v374, %v373
        %v402 = vpack.c.b16 %v376, %v375
        %v403 = vpack.c.b16 %v378, %v377
        %v404 = vpack.c.b16 %v380, %v379
        %v405 = vpack.c.b16 %v382, %v381
        %v406 = vpack.c.b16 %v384, %v383
        %v407 = vpack.c.b16 %v386, %v385
        %v408 = vpack.c.b16 %v388, %v387
        %v409 = vpack.c.b16 %v390, %v389
        %v410 = vpack.c.b16 %v392, %v391
        %v411 = vpack.c.b16 %v394, %v393
        %v412 = vpack.c.b16 %v396, %v395
        %vm413 = vcmask 31744
        %v415 = vsel %vm413, %v397, 0
        %v418 = vsel %vm413, %v398, 0
        %v421 = vsel %vm413, %v399, 0
        %v424 = vsel %vm413, %v400, 0
        %v427 = vsel %vm413, %v401, 0
        %v430 = vsel %vm413, %v402, 0
        %v433 = vsel %vm413, %v403, 0
        %v436 = vsel %vm413, %v404, 0
        %v439 = vsel %vm413, %v405, 0
        %v442 = vsel %vm413, %v406, 0
        %v445 = vsel %vm413, %v407, 0
        %v448 = vsel %vm413, %v408, 0
        %v451 = vsel %vm413, %v409, 0
        %v454 = vsel %vm413, %v410, 0
        %v457 = vsel %vm413, %v411, 0
        %v460 = vsel %vm413, %v412, 0
        %vm462 = vcmask 1041408
        %v464 = vsel %vm462, %v325, 0
        %466 = vmatprep.subr.bf16.mxu0 0
        %467 = vmatpush1.bf16.msra.mxu0 %v464
        %468 = vmatprep.subr.bf16.mxu0 0
        %469 = vmatpush1.bf16.msra.mxu0 0
        %470 = vmatprep.subr.bf16.mxu0 0
        %471 = vmatpush1.bf16.msra.mxu0 0
        %472 = vmatprep.subr.bf16.mxu0 0
        %473 = vmatpush1.bf16.msra.mxu0 0
        %474 = vmatprep.subr.bf16.mxu0 0
        %475 = vmatpush1.bf16.msra.mxu0 0
        %476 = vmatprep.subr.bf16.mxu0 0
        %477 = vmatpush1.bf16.msra.mxu0 0
        %478 = vmatprep.subr.bf16.mxu0 0
        %479 = vmatpush1.bf16.msra.mxu0 0
        %480 = vmatprep.subr.bf16.mxu0 0
        %481 = vmatpush1.bf16.msra.mxu0 0
        %482 = vmatprep.subr.bf16.mxu0 0
        %483 = vmatpush1.bf16.msra.mxu0 0
        %484 = vmatprep.subr.bf16.mxu0 0
        %485 = vmatpush1.bf16.msra.mxu0 0
        %486 = vmatprep.subr.bf16.mxu0 0
        %487 = vmatpush1.bf16.msra.mxu0 0
        %488 = vmatprep.subr.bf16.mxu0 0
        %489 = vmatpush1.bf16.msra.mxu0 0
        %490 = vmatprep.subr.bf16.mxu0 0
        %491 = vmatpush1.bf16.msra.mxu0 0
        %492 = vmatprep.subr.bf16.mxu0 0
        %493 = vmatpush1.bf16.msra.mxu0 0
        %494 = vmatprep.subr.bf16.mxu0 0
        %495 = vmatpush1.bf16.msra.mxu0 0
        %496 = vmatprep.subr.bf16.mxu0 0
        %497 = vmatpush1.bf16.msra.mxu0 0
        %498 = vmatprep.mubr.bf16.mxu0 0
        %499 = vmatmul.mubr.bf16.gmra.mrb[0].mxu0 %v415
        %v500 = vpop.f32.mrb[0].mxu0
        %v501 = vadd.f32 %v331, %v500
        %v502 = vpop.f32.mrb[0].mxu0
        %v503 = vpop.f32.mrb[0].mxu0
        %v504 = vadd.f32 %v331, %v503
        %v505 = vpop.f32.mrb[0].mxu0
        %506 = vmatprep.mubr.bf16.mxu0 0
        %507 = vmatmul.mubr.bf16.gmra.mrb[0].mxu0 %v418
        %v508 = vpop.f32.mrb[0].mxu0
        %v509 = vadd.f32 %v331, %v508
        %v510 = vpop.f32.mrb[0].mxu0
        %v511 = vpop.f32.mrb[0].mxu0
        %v512 = vadd.f32 %v331, %v511
        %v513 = vpop.f32.mrb[0].mxu0
        %514 = vmatprep.mubr.bf16.mxu0 0
        %515 = vmatmul.mubr.bf16.gmra.mrb[0].mxu0 %v421
        %v516 = vpop.f32.mrb[0].mxu0
        %v517 = vadd.f32 %v331, %v516
        %v518 = vpop.f32.mrb[0].mxu0
        %v519 = vpop.f32.mrb[0].mxu0
        %v520 = vadd.f32 %v331, %v519
        %v521 = vpop.f32.mrb[0].mxu0
        %522 = vmatprep.mubr.bf16.mxu0 0
        %523 = vmatmul.mubr.bf16.gmra.mrb[0].mxu0 %v424
        %v524 = vpop.f32.mrb[0].mxu0
        %v525 = vadd.f32 %v331, %v524
        %v526 = vpop.f32.mrb[0].mxu0
        %v527 = vpop.f32.mrb[0].mxu0
        %v528 = vadd.f32 %v331, %v527
        %v529 = vpop.f32.mrb[0].mxu0
        %530 = vmatprep.mubr.bf16.mxu0 0
        %531 = vmatmul.mubr.bf16.gmra.mrb[0].mxu0 %v427
        %v532 = vpop.f32.mrb[0].mxu0
        %v533 = vadd.f32 %v331, %v532
        %v534 = vpop.f32.mrb[0].mxu0
        %v535 = vpop.f32.mrb[0].mxu0
        %v536 = vadd.f32 %v331, %v535
        %v537 = vpop.f32.mrb[0].mxu0
        %538 = vmatprep.mubr.bf16.mxu0 0
        %539 = vmatmul.mubr.bf16.gmra.mrb[0].mxu0 %v430
        %v540 = vpop.f32.mrb[0].mxu0
        %v541 = vadd.f32 %v331, %v540
        %v542 = vpop.f32.mrb[0].mxu0
        %v543 = vpop.f32.mrb[0].mxu0
        %v544 = vadd.f32 %v331, %v543
        %v545 = vpop.f32.mrb[0].mxu0
        %546 = vmatprep.mubr.bf16.mxu0 0
        %547 = vmatmul.mubr.bf16.gmra.mrb[0].mxu0 %v433
        %v548 = vpop.f32.mrb[0].mxu0
        %v549 = vadd.f32 %v331, %v548
        %v550 = vpop.f32.mrb[0].mxu0
        %v551 = vpop.f32.mrb[0].mxu0
        %v552 = vadd.f32 %v331, %v551
        %v553 = vpop.f32.mrb[0].mxu0
        %554 = vmatprep.mubr.bf16.mxu0 0
        %555 = vmatmul.mubr.bf16.gmra.mrb[0].mxu0 %v436
        %v556 = vpop.f32.mrb[0].mxu0
        %v557 = vadd.f32 %v331, %v556
        %v558 = vpop.f32.mrb[0].mxu0
        %v559 = vpop.f32.mrb[0].mxu0
        %v560 = vadd.f32 %v331, %v559
        %v561 = vpop.f32.mrb[0].mxu0
        %562 = vmatprep.mubr.bf16.mxu0 0
        %563 = vmatmul.mubr.bf16.gmra.mrb[0].mxu0 %v439
        %v564 = vpop.f32.mrb[0].mxu0
        %v565 = vadd.f32 %v331, %v564
        %v566 = vpop.f32.mrb[0].mxu0
        %v567 = vpop.f32.mrb[0].mxu0
        %v568 = vadd.f32 %v331, %v567
        %v569 = vpop.f32.mrb[0].mxu0
        %570 = vmatprep.mubr.bf16.mxu0 0
        %571 = vmatmul.mubr.bf16.gmra.mrb[0].mxu0 %v442
        %v572 = vpop.f32.mrb[0].mxu0
        %v573 = vadd.f32 %v331, %v572
        %v574 = vpop.f32.mrb[0].mxu0
        %v575 = vpop.f32.mrb[0].mxu0
        %v576 = vadd.f32 %v331, %v575
        %v577 = vpop.f32.mrb[0].mxu0
        %578 = vmatprep.mubr.bf16.mxu0 0
        %579 = vmatmul.mubr.bf16.gmra.mrb[0].mxu0 %v445
        %v580 = vpop.f32.mrb[0].mxu0
        %v581 = vadd.f32 %v331, %v580
        %v582 = vpop.f32.mrb[0].mxu0
        %v583 = vpop.f32.mrb[0].mxu0
        %v584 = vadd.f32 %v331, %v583
        %v585 = vpop.f32.mrb[0].mxu0
        %586 = vmatprep.mubr.bf16.mxu0 0
        %587 = vmatmul.mubr.bf16.gmra.mrb[0].mxu0 %v448
        %v588 = vpop.f32.mrb[0].mxu0
        %v589 = vadd.f32 %v331, %v588
        %v590 = vpop.f32.mrb[0].mxu0
        %v591 = vpop.f32.mrb[0].mxu0
        %v592 = vadd.f32 %v331, %v591
        %v593 = vpop.f32.mrb[0].mxu0
        %594 = vmatprep.mubr.bf16.mxu0 0
        %595 = vmatmul.mubr.bf16.gmra.mrb[0].mxu0 %v451
        %v596 = vpop.f32.mrb[0].mxu0
        %v597 = vadd.f32 %v331, %v596
        %v598 = vpop.f32.mrb[0].mxu0
        %v599 = vpop.f32.mrb[0].mxu0
        %v600 = vadd.f32 %v331, %v599
        %v601 = vpop.f32.mrb[0].mxu0
        %602 = vmatprep.mubr.bf16.mxu0 0
        %603 = vmatmul.mubr.bf16.gmra.mrb[0].mxu0 %v454
        %v604 = vpop.f32.mrb[0].mxu0
        %v605 = vadd.f32 %v331, %v604
        %v606 = vpop.f32.mrb[0].mxu0
        %v607 = vpop.f32.mrb[0].mxu0
        %v608 = vadd.f32 %v331, %v607
        %v609 = vpop.f32.mrb[0].mxu0
        %610 = vmatprep.mubr.bf16.mxu0 0
        %611 = vmatmul.mubr.bf16.gmra.mrb[0].mxu0 %v457
        %v612 = vpop.f32.mrb[0].mxu0
        %v613 = vadd.f32 %v331, %v612
        %v614 = vpop.f32.mrb[0].mxu0
        %v615 = vpop.f32.mrb[0].mxu0
        %v616 = vadd.f32 %v331, %v615
        %v617 = vpop.f32.mrb[0].mxu0
        %618 = vmatprep.mubr.bf16.mxu0 0
        %619 = vmatmul.mubr.bf16.gmra.mrb[0].mxu0 %v460
        %v620 = vpop.f32.mrb[0].mxu0
        %v621 = vadd.f32 %v331, %v620
        %v622 = vpop.f32.mrb[0].mxu0
        %v623 = vpop.f32.mrb[0].mxu0
        %v624 = vadd.f32 %v331, %v623
        %v625 = vpop.f32.mrb[0].mxu0
        %626 = vdwg.mxu0
        %v627 = vld [vmem:[%s3] sm:$0x3]
        %v628 = vld [vmem:[%s4] sm:$0x1]
        %v630 = vlaneseq
        %v631 = vshrl.u32 %v630, 7
        %v632 = vsub.s32 0, %v631
        %v633 = vrot.slane %v628, %v632
        %v636 = vsel %vm462, %v627, 0
        %638 = vmatprep.subr.bf16.mxu0 0
        %639 = vmatpush1.bf16.msra.mxu0 %v636
        %640 = vmatprep.subr.bf16.mxu0 0
        %641 = vmatpush1.bf16.msra.mxu0 0
        %642 = vmatprep.subr.bf16.mxu0 0
        %643 = vmatpush1.bf16.msra.mxu0 0
        %644 = vmatprep.subr.bf16.mxu0 0
        %645 = vmatpush1.bf16.msra.mxu0 0
        %646 = vmatprep.subr.bf16.mxu0 0
        %647 = vmatpush1.bf16.msra.mxu0 0
        %648 = vmatprep.subr.bf16.mxu0 0
        %649 = vmatpush1.bf16.msra.mxu0 0
        %650 = vmatprep.subr.bf16.mxu0 0
        %651 = vmatpush1.bf16.msra.mxu0 0
        %652 = vmatprep.subr.bf16.mxu0 0
        %653 = vmatpush1.bf16.msra.mxu0 0
        %654 = vmatprep.subr.bf16.mxu0 0
        %655 = vmatpush1.bf16.msra.mxu0 0
        %656 = vmatprep.subr.bf16.mxu0 0
        %657 = vmatpush1.bf16.msra.mxu0 0
        %658 = vmatprep.subr.bf16.mxu0 0
        %659 = vmatpush1.bf16.msra.mxu0 0
        %660 = vmatprep.subr.bf16.mxu0 0
        %661 = vmatpush1.bf16.msra.mxu0 0
        %662 = vmatprep.subr.bf16.mxu0 0
        %663 = vmatpush1.bf16.msra.mxu0 0
        %664 = vmatprep.subr.bf16.mxu0 0
        %665 = vmatpush1.bf16.msra.mxu0 0
        %666 = vmatprep.subr.bf16.mxu0 0
        %667 = vmatpush1.bf16.msra.mxu0 0
        %668 = vmatprep.subr.bf16.mxu0 0
        %669 = vmatpush1.bf16.msra.mxu0 0
        %670 = vmatprep.mubr.bf16.mxu0 0
        %671 = vmatmul.mubr.bf16.gmra.mrb[0].mxu0 %v415
        %v672 = vpop.f32.mrb[0].mxu0
        %v673 = vadd.f32 %v633, %v672
        %v674 = vpop.f32.mrb[0].mxu0
        %v675 = vpop.f32.mrb[0].mxu0
        %v676 = vadd.f32 %v633, %v675
        %v677 = vpop.f32.mrb[0].mxu0
        %678 = vmatprep.mubr.bf16.mxu0 0
        %679 = vmatmul.mubr.bf16.gmra.mrb[0].mxu0 %v418
        %v680 = vpop.f32.mrb[0].mxu0
        %v681 = vadd.f32 %v633, %v680
        %v682 = vpop.f32.mrb[0].mxu0
        %v683 = vpop.f32.mrb[0].mxu0
        %v684 = vadd.f32 %v633, %v683
        %v685 = vpop.f32.mrb[0].mxu0
        %686 = vmatprep.mubr.bf16.mxu0 0
        %687 = vmatmul.mubr.bf16.gmra.mrb[0].mxu0 %v421
        %v688 = vpop.f32.mrb[0].mxu0
        %v689 = vadd.f32 %v633, %v688
        %v690 = vpop.f32.mrb[0].mxu0
        %v691 = vpop.f32.mrb[0].mxu0
        %v692 = vadd.f32 %v633, %v691
        %v693 = vpop.f32.mrb[0].mxu0
        %694 = vmatprep.mubr.bf16.mxu0 0
        %695 = vmatmul.mubr.bf16.gmra.mrb[0].mxu0 %v424
        %v696 = vpop.f32.mrb[0].mxu0
        %v697 = vadd.f32 %v633, %v696
        %v698 = vpop.f32.mrb[0].mxu0
        %v699 = vpop.f32.mrb[0].mxu0
        %v700 = vadd.f32 %v633, %v699
        %v701 = vpop.f32.mrb[0].mxu0
        %702 = vmatprep.mubr.bf16.mxu0 0
        %703 = vmatmul.mubr.bf16.gmra.mrb[0].mxu0 %v427
        %v704 = vpop.f32.mrb[0].mxu0
        %v705 = vadd.f32 %v633, %v704
        %v706 = vpop.f32.mrb[0].mxu0
        %v707 = vpop.f32.mrb[0].mxu0
        %v708 = vadd.f32 %v633, %v707
        %v709 = vpop.f32.mrb[0].mxu0
        %710 = vmatprep.mubr.bf16.mxu0 0
        %711 = vmatmul.mubr.bf16.gmra.mrb[0].mxu0 %v430
        %v712 = vpop.f32.mrb[0].mxu0
        %v713 = vadd.f32 %v633, %v712
        %v714 = vpop.f32.mrb[0].mxu0
        %v715 = vpop.f32.mrb[0].mxu0
        %v716 = vadd.f32 %v633, %v715
        %v717 = vpop.f32.mrb[0].mxu0
        %718 = vmatprep.mubr.bf16.mxu0 0
        %719 = vmatmul.mubr.bf16.gmra.mrb[0].mxu0 %v433
        %v720 = vpop.f32.mrb[0].mxu0
        %v721 = vadd.f32 %v633, %v720
        %v722 = vpop.f32.mrb[0].mxu0
        %v723 = vpop.f32.mrb[0].mxu0
        %v724 = vadd.f32 %v633, %v723
        %v725 = vpop.f32.mrb[0].mxu0
        %726 = vmatprep.mubr.bf16.mxu0 0
        %727 = vmatmul.mubr.bf16.gmra.mrb[0].mxu0 %v436
        %v728 = vpop.f32.mrb[0].mxu0
        %v729 = vadd.f32 %v633, %v728
        %v730 = vpop.f32.mrb[0].mxu0
        %v731 = vpop.f32.mrb[0].mxu0
        %v732 = vadd.f32 %v633, %v731
        %v733 = vpop.f32.mrb[0].mxu0
        %734 = vmatprep.mubr.bf16.mxu0 0
        %735 = vmatmul.mubr.bf16.gmra.mrb[0].mxu0 %v439
        %v736 = vpop.f32.mrb[0].mxu0
        %v737 = vadd.f32 %v633, %v736
        %v738 = vpop.f32.mrb[0].mxu0
        %v739 = vpop.f32.mrb[0].mxu0
        %v740 = vadd.f32 %v633, %v739
        %v741 = vpop.f32.mrb[0].mxu0
        %742 = vmatprep.mubr.bf16.mxu0 0
        %743 = vmatmul.mubr.bf16.gmra.mrb[0].mxu0 %v442
        %v744 = vpop.f32.mrb[0].mxu0
        %v745 = vadd.f32 %v633, %v744
        %v746 = vpop.f32.mrb[0].mxu0
        %v747 = vpop.f32.mrb[0].mxu0
        %v748 = vadd.f32 %v633, %v747
        %v749 = vpop.f32.mrb[0].mxu0
        %750 = vmatprep.mubr.bf16.mxu0 0
        %751 = vmatmul.mubr.bf16.gmra.mrb[0].mxu0 %v445
        %v752 = vpop.f32.mrb[0].mxu0
        %v753 = vadd.f32 %v633, %v752
        %v754 = vpop.f32.mrb[0].mxu0
        %v755 = vpop.f32.mrb[0].mxu0
        %v756 = vadd.f32 %v633, %v755
        %v757 = vpop.f32.mrb[0].mxu0
        %758 = vmatprep.mubr.bf16.mxu0 0
        %759 = vmatmul.mubr.bf16.gmra.mrb[0].mxu0 %v448
        %v760 = vpop.f32.mrb[0].mxu0
        %v761 = vadd.f32 %v633, %v760
        %v762 = vpop.f32.mrb[0].mxu0
        %v763 = vpop.f32.mrb[0].mxu0
        %v764 = vadd.f32 %v633, %v763
        %v765 = vpop.f32.mrb[0].mxu0
        %766 = vmatprep.mubr.bf16.mxu0 0
        %767 = vmatmul.mubr.bf16.gmra.mrb[0].mxu0 %v451
        %v768 = vpop.f32.mrb[0].mxu0
        %v769 = vadd.f32 %v633, %v768
        %v770 = vpop.f32.mrb[0].mxu0
        %v771 = vpop.f32.mrb[0].mxu0
        %v772 = vadd.f32 %v633, %v771
        %v773 = vpop.f32.mrb[0].mxu0
        %774 = vmatprep.mubr.bf16.mxu0 0
        %775 = vmatmul.mubr.bf16.gmra.mrb[0].mxu0 %v454
        %v776 = vpop.f32.mrb[0].mxu0
        %v777 = vadd.f32 %v633, %v776
        %v778 = vpop.f32.mrb[0].mxu0
        %v779 = vpop.f32.mrb[0].mxu0
        %v780 = vadd.f32 %v633, %v779
        %v781 = vpop.f32.mrb[0].mxu0
        %782 = vmatprep.mubr.bf16.mxu0 0
        %783 = vmatmul.mubr.bf16.gmra.mrb[0].mxu0 %v457
        %v784 = vpop.f32.mrb[0].mxu0
        %v785 = vadd.f32 %v633, %v784
        %v786 = vpop.f32.mrb[0].mxu0
        %v787 = vpop.f32.mrb[0].mxu0
        %v788 = vadd.f32 %v633, %v787
        %v789 = vpop.f32.mrb[0].mxu0
        %790 = vmatprep.mubr.bf16.mxu0 0
        %791 = vmatmul.mubr.bf16.gmra.mrb[0].mxu0 %v460
        %v792 = vpop.f32.mrb[0].mxu0
        %v793 = vadd.f32 %v633, %v792
        %v794 = vpop.f32.mrb[0].mxu0
        %v795 = vpop.f32.mrb[0].mxu0
        %v796 = vadd.f32 %v633, %v795
        %v797 = vpop.f32.mrb[0].mxu0
        %798 = vdwg.mxu0
        %v799 = vpack.c.bf16 %v504, %v501
        %v800 = vpack.c.bf16 %v512, %v509
        %v801 = vpack.c.bf16 %v520, %v517
        %v802 = vpack.c.bf16 %v528, %v525
        %v803 = vpack.c.bf16 %v536, %v533
        %v804 = vpack.c.bf16 %v544, %v541
        %v805 = vpack.c.bf16 %v552, %v549
        %v806 = vpack.c.bf16 %v560, %v557
        %v807 = vpack.c.bf16 %v568, %v565
        %v808 = vpack.c.bf16 %v576, %v573
        %v809 = vpack.c.bf16 %v584, %v581
        %v810 = vpack.c.bf16 %v592, %v589
        %v811 = vpack.c.bf16 %v600, %v597
        %v812 = vpack.c.bf16 %v608, %v605
        %v813 = vpack.c.bf16 %v616, %v613
        %v814 = vpack.c.bf16 %v624, %v621
        %v815 = vpack.c.bf16 %v676, %v673
        %v816 = vpack.c.bf16 %v684, %v681
        %v817 = vpack.c.bf16 %v692, %v689
        %v818 = vpack.c.bf16 %v700, %v697
        %v819 = vpack.c.bf16 %v708, %v705
        %v820 = vpack.c.bf16 %v716, %v713
        %v821 = vpack.c.bf16 %v724, %v721
        %v822 = vpack.c.bf16 %v732, %v729
        %v823 = vpack.c.bf16 %v740, %v737
        %v824 = vpack.c.bf16 %v748, %v745
        %v825 = vpack.c.bf16 %v756, %v753
        %v826 = vpack.c.bf16 %v764, %v761
        %v827 = vpack.c.bf16 %v772, %v769
        %v828 = vpack.c.bf16 %v780, %v777
        %v829 = vpack.c.bf16 %v788, %v785
        %v830 = vpack.c.bf16 %v796, %v793
        %v832 = vsel %vm413, %v799, 0
        %v835 = vsel %vm413, %v800, 0
        %v838 = vsel %vm413, %v801, 0
        %v841 = vsel %vm413, %v802, 0
        %v844 = vsel %vm413, %v803, 0
        %v847 = vsel %vm413, %v804, 0
        %v850 = vsel %vm413, %v805, 0
        %v853 = vsel %vm413, %v806, 0
        %v856 = vsel %vm413, %v807, 0
        %v859 = vsel %vm413, %v808, 0
        %v862 = vsel %vm413, %v809, 0
        %v865 = vsel %vm413, %v810, 0
        %v868 = vsel %vm413, %v811, 0
        %v871 = vsel %vm413, %v812, 0
        %v874 = vsel %vm413, %v813, 0
        %v877 = vsel %vm413, %v814, 0
        %v880 = vsel %vm413, %v815, 0
        %v883 = vsel %vm413, %v816, 0
        %v886 = vsel %vm413, %v817, 0
        %v889 = vsel %vm413, %v818, 0
        %v892 = vsel %vm413, %v819, 0
        %v895 = vsel %vm413, %v820, 0
        %v898 = vsel %vm413, %v821, 0
        %v901 = vsel %vm413, %v822, 0
        %v904 = vsel %vm413, %v823, 0
        %v907 = vsel %vm413, %v824, 0
        %v910 = vsel %vm413, %v825, 0
        %v913 = vsel %vm413, %v826, 0
        %v916 = vsel %vm413, %v827, 0
        %v919 = vsel %vm413, %v828, 0
        %v922 = vsel %vm413, %v829, 0
        %v925 = vsel %vm413, %v830, 0
        %927 = vmatprep.subr.bf16.mxu0 0
        %928 = vmatpush1.bf16.xpose.msra.mxu0 %v880
        %929 = vmatprep.subr.bf16.mxu0 0
        %930 = vmatpush1.bf16.xpose.msra.mxu0 %v883
        %931 = vmatprep.subr.bf16.mxu0 0
        %932 = vmatpush1.bf16.xpose.msra.mxu0 %v886
        %933 = vmatprep.subr.bf16.mxu0 0
        %934 = vmatpush1.bf16.xpose.msra.mxu0 %v889
        %935 = vmatprep.subr.bf16.mxu0 0
        %936 = vmatpush1.bf16.xpose.msra.mxu0 %v892
        %937 = vmatprep.subr.bf16.mxu0 0
        %938 = vmatpush1.bf16.xpose.msra.mxu0 %v895
        %939 = vmatprep.subr.bf16.mxu0 0
        %940 = vmatpush1.bf16.xpose.msra.mxu0 %v898
        %941 = vmatprep.subr.bf16.mxu0 0
        %942 = vmatpush1.bf16.xpose.msra.mxu0 %v901
        %943 = vmatprep.subr.bf16.mxu0 0
        %944 = vmatpush1.bf16.xpose.msra.mxu0 %v904
        %945 = vmatprep.subr.bf16.mxu0 0
        %946 = vmatpush1.bf16.xpose.msra.mxu0 %v907
        %947 = vmatprep.subr.bf16.mxu0 0
        %948 = vmatpush1.bf16.xpose.msra.mxu0 %v910
        %949 = vmatprep.subr.bf16.mxu0 0
        %950 = vmatpush1.bf16.xpose.msra.mxu0 %v913
        %951 = vmatprep.subr.bf16.mxu0 0
        %952 = vmatpush1.bf16.xpose.msra.mxu0 %v916
        %953 = vmatprep.subr.bf16.mxu0 0
        %954 = vmatpush1.bf16.xpose.msra.mxu0 %v919
        %955 = vmatprep.subr.bf16.mxu0 0
        %956 = vmatpush1.bf16.xpose.msra.mxu0 %v922
        %957 = vmatprep.subr.bf16.mxu0 0
        %958 = vmatpush1.bf16.xpose.msra.mxu0 %v925
        %959 = vmatprep.mubr.bf16.mxu0 0
        %960 = vmatmul.mubr.bf16.gmra.mrb[0].mxu0 %v832
        %v961 = vpop.f32.mrb[0].mxu0
        %v962 = vadd.f32 0.0, %v961
        %v963 = vpop.f32.mrb[0].mxu0
        %v964 = vadd.f32 0.0, %v963
        %v965 = vpop.f32.mrb[0].mxu0
        %v966 = vadd.f32 0.0, %v965
        %v967 = vpop.f32.mrb[0].mxu0
        %v968 = vadd.f32 0.0, %v967
        %969 = vmatprep.mubr.bf16.mxu0 0
        %970 = vmatmul.mubr.bf16.gmra.mrb[0].mxu0 %v835
        %v971 = vpop.f32.mrb[0].mxu0
        %v972 = vadd.f32 0.0, %v971
        %v973 = vpop.f32.mrb[0].mxu0
        %v974 = vadd.f32 0.0, %v973
        %v975 = vpop.f32.mrb[0].mxu0
        %v976 = vadd.f32 0.0, %v975
        %v977 = vpop.f32.mrb[0].mxu0
        %v978 = vadd.f32 0.0, %v977
        %979 = vmatprep.mubr.bf16.mxu0 0
        %980 = vmatmul.mubr.bf16.gmra.mrb[0].mxu0 %v838
        %v981 = vpop.f32.mrb[0].mxu0
        %v982 = vadd.f32 0.0, %v981
        %v983 = vpop.f32.mrb[0].mxu0
        %v984 = vadd.f32 0.0, %v983
        %v985 = vpop.f32.mrb[0].mxu0
        %v986 = vadd.f32 0.0, %v985
        %v987 = vpop.f32.mrb[0].mxu0
        %v988 = vadd.f32 0.0, %v987
        %989 = vmatprep.mubr.bf16.mxu0 0
        %990 = vmatmul.mubr.bf16.gmra.mrb[0].mxu0 %v841
        %v991 = vpop.f32.mrb[0].mxu0
        %v992 = vadd.f32 0.0, %v991
        %v993 = vpop.f32.mrb[0].mxu0
        %v994 = vadd.f32 0.0, %v993
        %v995 = vpop.f32.mrb[0].mxu0
        %v996 = vadd.f32 0.0, %v995
        %v997 = vpop.f32.mrb[0].mxu0
        %v998 = vadd.f32 0.0, %v997
        %999 = vmatprep.mubr.bf16.mxu0 0
        %1000 = vmatmul.mubr.bf16.gmra.mrb[0].mxu0 %v844
        %v1001 = vpop.f32.mrb[0].mxu0
        %v1002 = vadd.f32 0.0, %v1001
        %v1003 = vpop.f32.mrb[0].mxu0
        %v1004 = vadd.f32 0.0, %v1003
        %v1005 = vpop.f32.mrb[0].mxu0
        %v1006 = vadd.f32 0.0, %v1005
        %v1007 = vpop.f32.mrb[0].mxu0
        %v1008 = vadd.f32 0.0, %v1007
        %1009 = vmatprep.mubr.bf16.mxu0 0
        %1010 = vmatmul.mubr.bf16.gmra.mrb[0].mxu0 %v847
        %v1011 = vpop.f32.mrb[0].mxu0
        %v1012 = vadd.f32 0.0, %v1011
        %v1013 = vpop.f32.mrb[0].mxu0
        %v1014 = vadd.f32 0.0, %v1013
        %v1015 = vpop.f32.mrb[0].mxu0
        %v1016 = vadd.f32 0.0, %v1015
        %v1017 = vpop.f32.mrb[0].mxu0
        %v1018 = vadd.f32 0.0, %v1017
        %1019 = vmatprep.mubr.bf16.mxu0 0
        %1020 = vmatmul.mubr.bf16.gmra.mrb[0].mxu0 %v850
        %v1021 = vpop.f32.mrb[0].mxu0
        %v1022 = vadd.f32 0.0, %v1021
        %v1023 = vpop.f32.mrb[0].mxu0
        %v1024 = vadd.f32 0.0, %v1023
        %v1025 = vpop.f32.mrb[0].mxu0
        %v1026 = vadd.f32 0.0, %v1025
        %v1027 = vpop.f32.mrb[0].mxu0
        %v1028 = vadd.f32 0.0, %v1027
        %1029 = vmatprep.mubr.bf16.mxu0 0
        %1030 = vmatmul.mubr.bf16.gmra.mrb[0].mxu0 %v853
        %v1031 = vpop.f32.mrb[0].mxu0
        %v1032 = vadd.f32 0.0, %v1031
        %v1033 = vpop.f32.mrb[0].mxu0
        %v1034 = vadd.f32 0.0, %v1033
        %v1035 = vpop.f32.mrb[0].mxu0
        %v1036 = vadd.f32 0.0, %v1035
        %v1037 = vpop.f32.mrb[0].mxu0
        %v1038 = vadd.f32 0.0, %v1037
        %1039 = vmatprep.mubr.bf16.mxu0 0
        %1040 = vmatmul.mubr.bf16.gmra.mrb[0].mxu0 %v856
        %v1041 = vpop.f32.mrb[0].mxu0
        %v1042 = vadd.f32 0.0, %v1041
        %v1043 = vpop.f32.mrb[0].mxu0
        %v1044 = vadd.f32 0.0, %v1043
        %v1045 = vpop.f32.mrb[0].mxu0
        %v1046 = vadd.f32 0.0, %v1045
        %v1047 = vpop.f32.mrb[0].mxu0
        %v1048 = vadd.f32 0.0, %v1047
        %1049 = vmatprep.mubr.bf16.mxu0 0
        %1050 = vmatmul.mubr.bf16.gmra.mrb[0].mxu0 %v859
        %v1051 = vpop.f32.mrb[0].mxu0
        %v1052 = vadd.f32 0.0, %v1051
        %v1053 = vpop.f32.mrb[0].mxu0
        %v1054 = vadd.f32 0.0, %v1053
        %v1055 = vpop.f32.mrb[0].mxu0
        %v1056 = vadd.f32 0.0, %v1055
        %v1057 = vpop.f32.mrb[0].mxu0
        %v1058 = vadd.f32 0.0, %v1057
        %1059 = vmatprep.mubr.bf16.mxu0 0
        %1060 = vmatmul.mubr.bf16.gmra.mrb[0].mxu0 %v862
        %v1061 = vpop.f32.mrb[0].mxu0
        %v1062 = vadd.f32 0.0, %v1061
        %v1063 = vpop.f32.mrb[0].mxu0
        %v1064 = vadd.f32 0.0, %v1063
        %v1065 = vpop.f32.mrb[0].mxu0
        %v1066 = vadd.f32 0.0, %v1065
        %v1067 = vpop.f32.mrb[0].mxu0
        %v1068 = vadd.f32 0.0, %v1067
        %1069 = vmatprep.mubr.bf16.mxu0 0
        %1070 = vmatmul.mubr.bf16.gmra.mrb[0].mxu0 %v865
        %v1071 = vpop.f32.mrb[0].mxu0
        %v1072 = vadd.f32 0.0, %v1071
        %v1073 = vpop.f32.mrb[0].mxu0
        %v1074 = vadd.f32 0.0, %v1073
        %v1075 = vpop.f32.mrb[0].mxu0
        %v1076 = vadd.f32 0.0, %v1075
        %v1077 = vpop.f32.mrb[0].mxu0
        %v1078 = vadd.f32 0.0, %v1077
        %1079 = vmatprep.mubr.bf16.mxu0 0
        %1080 = vmatmul.mubr.bf16.gmra.mrb[0].mxu0 %v868
        %v1081 = vpop.f32.mrb[0].mxu0
        %v1082 = vadd.f32 0.0, %v1081
        %v1083 = vpop.f32.mrb[0].mxu0
        %v1084 = vadd.f32 0.0, %v1083
        %v1085 = vpop.f32.mrb[0].mxu0
        %v1086 = vadd.f32 0.0, %v1085
        %v1087 = vpop.f32.mrb[0].mxu0
        %v1088 = vadd.f32 0.0, %v1087
        %1089 = vmatprep.mubr.bf16.mxu0 0
        %1090 = vmatmul.mubr.bf16.gmra.mrb[0].mxu0 %v871
        %v1091 = vpop.f32.mrb[0].mxu0
        %v1092 = vadd.f32 0.0, %v1091
        %v1093 = vpop.f32.mrb[0].mxu0
        %v1094 = vadd.f32 0.0, %v1093
        %v1095 = vpop.f32.mrb[0].mxu0
        %v1096 = vadd.f32 0.0, %v1095
        %v1097 = vpop.f32.mrb[0].mxu0
        %v1098 = vadd.f32 0.0, %v1097
        %1099 = vmatprep.mubr.bf16.mxu0 0
        %1100 = vmatmul.mubr.bf16.gmra.mrb[0].mxu0 %v874
        %v1101 = vpop.f32.mrb[0].mxu0
        %v1102 = vadd.f32 0.0, %v1101
        %v1103 = vpop.f32.mrb[0].mxu0
        %v1104 = vadd.f32 0.0, %v1103
        %v1105 = vpop.f32.mrb[0].mxu0
        %v1106 = vadd.f32 0.0, %v1105
        %v1107 = vpop.f32.mrb[0].mxu0
        %v1108 = vadd.f32 0.0, %v1107
        %1109 = vmatprep.mubr.bf16.mxu0 0
        %1110 = vmatmul.mubr.bf16.gmra.mrb[0].mxu0 %v877
        %v1111 = vpop.f32.mrb[0].mxu0
        %v1112 = vadd.f32 0.0, %v1111
        %v1113 = vpop.f32.mrb[0].mxu0
        %v1114 = vadd.f32 0.0, %v1113
        %v1115 = vpop.f32.mrb[0].mxu0
        %v1116 = vadd.f32 0.0, %v1115
        %v1117 = vpop.f32.mrb[0].mxu0
        %v1118 = vadd.f32 0.0, %v1117
        %1119 = vdwg.mxu0
        %v1120 = vmax.f32 %v962, %v964
        %1121 = vmax.xlane.f32.xlu0 %v1120
        %v1122 = vpop.xlane.xlu0 %1121
        %v1123 = vmax.f32 %v966, %v968
        %1124 = vmax.xlane.f32.xlu0 %v1123
        %v1125 = vpop.xlane.xlu0 %1124
        %v1126 = vmax.f32 %v972, %v974
        %1127 = vmax.xlane.f32.xlu0 %v1126
        %v1128 = vpop.xlane.xlu0 %1127
        %v1129 = vmax.f32 %v976, %v978
        %1130 = vmax.xlane.f32.xlu0 %v1129
        %v1131 = vpop.xlane.xlu0 %1130
        %v1132 = vmax.f32 %v982, %v984
        %1133 = vmax.xlane.f32.xlu0 %v1132
        %v1134 = vpop.xlane.xlu0 %1133
        %v1135 = vmax.f32 %v986, %v988
        %1136 = vmax.xlane.f32.xlu0 %v1135
        %v1137 = vpop.xlane.xlu0 %1136
        %v1138 = vmax.f32 %v992, %v994
        %1139 = vmax.xlane.f32.xlu0 %v1138
        %v1140 = vpop.xlane.xlu0 %1139
        %v1141 = vmax.f32 %v996, %v998
        %1142 = vmax.xlane.f32.xlu0 %v1141
        %v1143 = vpop.xlane.xlu0 %1142
        %v1144 = vmax.f32 %v1002, %v1004
        %1145 = vmax.xlane.f32.xlu0 %v1144
        %v1146 = vpop.xlane.xlu0 %1145
        %v1147 = vmax.f32 %v1006, %v1008
        %1148 = vmax.xlane.f32.xlu0 %v1147
        %v1149 = vpop.xlane.xlu0 %1148
        %v1150 = vmax.f32 %v1012, %v1014
        %1151 = vmax.xlane.f32.xlu0 %v1150
        %v1152 = vpop.xlane.xlu0 %1151
        %v1153 = vmax.f32 %v1016, %v1018
        %1154 = vmax.xlane.f32.xlu0 %v1153
        %v1155 = vpop.xlane.xlu0 %1154
        %v1156 = vmax.f32 %v1022, %v1024
        %1157 = vmax.xlane.f32.xlu0 %v1156
        %v1158 = vpop.xlane.xlu0 %1157
        %v1159 = vmax.f32 %v1026, %v1028
        %1160 = vmax.xlane.f32.xlu0 %v1159
        %v1161 = vpop.xlane.xlu0 %1160
        %v1162 = vmax.f32 %v1032, %v1034
        %1163 = vmax.xlane.f32.xlu0 %v1162
        %v1164 = vpop.xlane.xlu0 %1163
        %v1165 = vmax.f32 %v1036, %v1038
        %1166 = vmax.xlane.f32.xlu0 %v1165
        %v1167 = vpop.xlane.xlu0 %1166
        %v1168 = vmax.f32 %v1042, %v1044
        %1169 = vmax.xlane.f32.xlu0 %v1168
        %v1170 = vpop.xlane.xlu0 %1169
        %v1171 = vmax.f32 %v1046, %v1048
        %1172 = vmax.xlane.f32.xlu0 %v1171
        %v1173 = vpop.xlane.xlu0 %1172
        %v1174 = vmax.f32 %v1052, %v1054
        %1175 = vmax.xlane.f32.xlu0 %v1174
        %v1176 = vpop.xlane.xlu0 %1175
        %v1177 = vmax.f32 %v1056, %v1058
        %1178 = vmax.xlane.f32.xlu0 %v1177
        %v1179 = vpop.xlane.xlu0 %1178
        %v1180 = vmax.f32 %v1062, %v1064
        %1181 = vmax.xlane.f32.xlu0 %v1180
        %v1182 = vpop.xlane.xlu0 %1181
        %v1183 = vmax.f32 %v1066, %v1068
        %1184 = vmax.xlane.f32.xlu0 %v1183
        %v1185 = vpop.xlane.xlu0 %1184
        %v1186 = vmax.f32 %v1072, %v1074
        %1187 = vmax.xlane.f32.xlu0 %v1186
        %v1188 = vpop.xlane.xlu0 %1187
        %v1189 = vmax.f32 %v1076, %v1078
        %1190 = vmax.xlane.f32.xlu0 %v1189
        %v1191 = vpop.xlane.xlu0 %1190
        %v1192 = vmax.f32 %v1082, %v1084
        %1193 = vmax.xlane.f32.xlu0 %v1192
        %v1194 = vpop.xlane.xlu0 %1193
        %v1195 = vmax.f32 %v1086, %v1088
        %1196 = vmax.xlane.f32.xlu0 %v1195
        %v1197 = vpop.xlane.xlu0 %1196
        %v1198 = vmax.f32 %v1092, %v1094
        %1199 = vmax.xlane.f32.xlu0 %v1198
        %v1200 = vpop.xlane.xlu0 %1199
        %v1201 = vmax.f32 %v1096, %v1098
        %1202 = vmax.xlane.f32.xlu0 %v1201
        %v1203 = vpop.xlane.xlu0 %1202
        %v1204 = vmax.f32 %v1102, %v1104
        %1205 = vmax.xlane.f32.xlu0 %v1204
        %v1206 = vpop.xlane.xlu0 %1205
        %v1207 = vmax.f32 %v1106, %v1108
        %1208 = vmax.xlane.f32.xlu0 %v1207
        %v1209 = vpop.xlane.xlu0 %1208
        %v1210 = vmax.f32 %v1112, %v1114
        %1211 = vmax.xlane.f32.xlu0 %v1210
        %v1212 = vpop.xlane.xlu0 %1211
        %v1213 = vmax.f32 %v1116, %v1118
        %1214 = vmax.xlane.f32.xlu0 %v1213
        %v1215 = vpop.xlane.xlu0 %1214
        %v1216 = vsub.f32 %v962, %v1122
        %v1217 = vsub.f32 %v964, %v1122
        %v1218 = vsub.f32 %v966, %v1125
        %v1219 = vsub.f32 %v968, %v1125
        %v1220 = vsub.f32 %v972, %v1128
        %v1221 = vsub.f32 %v974, %v1128
        %v1222 = vsub.f32 %v976, %v1131
        %v1223 = vsub.f32 %v978, %v1131
        %v1224 = vsub.f32 %v982, %v1134
        %v1225 = vsub.f32 %v984, %v1134
        %v1226 = vsub.f32 %v986, %v1137
        %v1227 = vsub.f32 %v988, %v1137
        %v1228 = vsub.f32 %v992, %v1140
        %v1229 = vsub.f32 %v994, %v1140
        %v1230 = vsub.f32 %v996, %v1143
        %v1231 = vsub.f32 %v998, %v1143
        %v1232 = vsub.f32 %v1002, %v1146
        %v1233 = vsub.f32 %v1004, %v1146
        %v1234 = vsub.f32 %v1006, %v1149
        %v1235 = vsub.f32 %v1008, %v1149
        %v1236 = vsub.f32 %v1012, %v1152
        %v1237 = vsub.f32 %v1014, %v1152
        %v1238 = vsub.f32 %v1016, %v1155
        %v1239 = vsub.f32 %v1018, %v1155
        %v1240 = vsub.f32 %v1022, %v1158
        %v1241 = vsub.f32 %v1024, %v1158
        %v1242 = vsub.f32 %v1026, %v1161
        %v1243 = vsub.f32 %v1028, %v1161
        %v1244 = vsub.f32 %v1032, %v1164
        %v1245 = vsub.f32 %v1034, %v1164
        %v1246 = vsub.f32 %v1036, %v1167
        %v1247 = vsub.f32 %v1038, %v1167
        %v1248 = vsub.f32 %v1042, %v1170
        %v1249 = vsub.f32 %v1044, %v1170
        %v1250 = vsub.f32 %v1046, %v1173
        %v1251 = vsub.f32 %v1048, %v1173
        %v1252 = vsub.f32 %v1052, %v1176
        %v1253 = vsub.f32 %v1054, %v1176
        %v1254 = vsub.f32 %v1056, %v1179
        %v1255 = vsub.f32 %v1058, %v1179
        %v1256 = vsub.f32 %v1062, %v1182
        %v1257 = vsub.f32 %v1064, %v1182
        %v1258 = vsub.f32 %v1066, %v1185
        %v1259 = vsub.f32 %v1068, %v1185
        %v1260 = vsub.f32 %v1072, %v1188
        %v1261 = vsub.f32 %v1074, %v1188
        %v1262 = vsub.f32 %v1076, %v1191
        %v1263 = vsub.f32 %v1078, %v1191
        %v1264 = vsub.f32 %v1082, %v1194
        %v1265 = vsub.f32 %v1084, %v1194
        %v1266 = vsub.f32 %v1086, %v1197
        %v1267 = vsub.f32 %v1088, %v1197
        %v1268 = vsub.f32 %v1092, %v1200
        %v1269 = vsub.f32 %v1094, %v1200
        %v1270 = vsub.f32 %v1096, %v1203
        %v1271 = vsub.f32 %v1098, %v1203
        %v1272 = vsub.f32 %v1102, %v1206
        %v1273 = vsub.f32 %v1104, %v1206
        %v1274 = vsub.f32 %v1106, %v1209
        %v1275 = vsub.f32 %v1108, %v1209
        %v1276 = vsub.f32 %v1112, %v1212
        %v1277 = vsub.f32 %v1114, %v1212
        %v1278 = vsub.f32 %v1116, %v1215
        %v1279 = vsub.f32 %v1118, %v1215
        %v1280 = vmul.f32 %v1216, 1.442695
        %v1281 = vpow.pop %v1280
        %v1282 = vmul.f32 %v1217, 1.442695
        %v1283 = vpow.pop %v1282
        %v1284 = vmul.f32 %v1218, 1.442695
        %v1285 = vpow.pop %v1284
        %v1286 = vmul.f32 %v1219, 1.442695
        %v1287 = vpow.pop %v1286
        %v1288 = vmul.f32 %v1220, 1.442695
        %v1289 = vpow.pop %v1288
        %v1290 = vmul.f32 %v1221, 1.442695
        %v1291 = vpow.pop %v1290
        %v1292 = vmul.f32 %v1222, 1.442695
        %v1293 = vpow.pop %v1292
        %v1294 = vmul.f32 %v1223, 1.442695
        %v1295 = vpow.pop %v1294
        %v1296 = vmul.f32 %v1224, 1.442695
        %v1297 = vpow.pop %v1296
        %v1298 = vmul.f32 %v1225, 1.442695
        %v1299 = vpow.pop %v1298
        %v1300 = vmul.f32 %v1226, 1.442695
        %v1301 = vpow.pop %v1300
        %v1302 = vmul.f32 %v1227, 1.442695
        %v1303 = vpow.pop %v1302
        %v1304 = vmul.f32 %v1228, 1.442695
        %v1305 = vpow.pop %v1304
        %v1306 = vmul.f32 %v1229, 1.442695
        %v1307 = vpow.pop %v1306
        %v1308 = vmul.f32 %v1230, 1.442695
        %v1309 = vpow.pop %v1308
        %v1310 = vmul.f32 %v1231, 1.442695
        %v1311 = vpow.pop %v1310
        %v1312 = vmul.f32 %v1232, 1.442695
        %v1313 = vpow.pop %v1312
        %v1314 = vmul.f32 %v1233, 1.442695
        %v1315 = vpow.pop %v1314
        %v1316 = vmul.f32 %v1234, 1.442695
        %v1317 = vpow.pop %v1316
        %v1318 = vmul.f32 %v1235, 1.442695
        %v1319 = vpow.pop %v1318
        %v1320 = vmul.f32 %v1236, 1.442695
        %v1321 = vpow.pop %v1320
        %v1322 = vmul.f32 %v1237, 1.442695
        %v1323 = vpow.pop %v1322
        %v1324 = vmul.f32 %v1238, 1.442695
        %v1325 = vpow.pop %v1324
        %v1326 = vmul.f32 %v1239, 1.442695
        %v1327 = vpow.pop %v1326
        %v1328 = vmul.f32 %v1240, 1.442695
        %v1329 = vpow.pop %v1328
        %v1330 = vmul.f32 %v1241, 1.442695
        %v1331 = vpow.pop %v1330
        %v1332 = vmul.f32 %v1242, 1.442695
        %v1333 = vpow.pop %v1332
        %v1334 = vmul.f32 %v1243, 1.442695
        %v1335 = vpow.pop %v1334
        %v1336 = vmul.f32 %v1244, 1.442695
        %v1337 = vpow.pop %v1336
        %v1338 = vmul.f32 %v1245, 1.442695
        %v1339 = vpow.pop %v1338
        %v1340 = vmul.f32 %v1246, 1.442695
        %v1341 = vpow.pop %v1340
        %v1342 = vmul.f32 %v1247, 1.442695
        %v1343 = vpow.pop %v1342
        %v1344 = vmul.f32 %v1248, 1.442695
        %v1345 = vpow.pop %v1344
        %v1346 = vmul.f32 %v1249, 1.442695
        %v1347 = vpow.pop %v1346
        %v1348 = vmul.f32 %v1250, 1.442695
        %v1349 = vpow.pop %v1348
        %v1350 = vmul.f32 %v1251, 1.442695
        %v1351 = vpow.pop %v1350
        %v1352 = vmul.f32 %v1252, 1.442695
        %v1353 = vpow.pop %v1352
        %v1354 = vmul.f32 %v1253, 1.442695
        %v1355 = vpow.pop %v1354
        %v1356 = vmul.f32 %v1254, 1.442695
        %v1357 = vpow.pop %v1356
        %v1358 = vmul.f32 %v1255, 1.442695
        %v1359 = vpow.pop %v1358
        %v1360 = vmul.f32 %v1256, 1.442695
        %v1361 = vpow.pop %v1360
        %v1362 = vmul.f32 %v1257, 1.442695
        %v1363 = vpow.pop %v1362
        %v1364 = vmul.f32 %v1258, 1.442695
        %v1365 = vpow.pop %v1364
        %v1366 = vmul.f32 %v1259, 1.442695
        %v1367 = vpow.pop %v1366
        %v1368 = vmul.f32 %v1260, 1.442695
        %v1369 = vpow.pop %v1368
        %v1370 = vmul.f32 %v1261, 1.442695
        %v1371 = vpow.pop %v1370
        %v1372 = vmul.f32 %v1262, 1.442695
        %v1373 = vpow.pop %v1372
        %v1374 = vmul.f32 %v1263, 1.442695
        %v1375 = vpow.pop %v1374
        %v1376 = vmul.f32 %v1264, 1.442695
        %v1377 = vpow.pop %v1376
        %v1378 = vmul.f32 %v1265, 1.442695
        %v1379 = vpow.pop %v1378
        %v1380 = vmul.f32 %v1266, 1.442695
        %v1381 = vpow.pop %v1380
        %v1382 = vmul.f32 %v1267, 1.442695
        %v1383 = vpow.pop %v1382
        %v1384 = vmul.f32 %v1268, 1.442695
        %v1385 = vpow.pop %v1384
        %v1386 = vmul.f32 %v1269, 1.442695
        %v1387 = vpow.pop %v1386
        %v1388 = vmul.f32 %v1270, 1.442695
        %v1389 = vpow.pop %v1388
        %v1390 = vmul.f32 %v1271, 1.442695
        %v1391 = vpow.pop %v1390
        %v1392 = vmul.f32 %v1272, 1.442695
        %v1393 = vpow.pop %v1392
        %v1394 = vmul.f32 %v1273, 1.442695
        %v1395 = vpow.pop %v1394
        %v1396 = vmul.f32 %v1274, 1.442695
        %v1397 = vpow.pop %v1396
        %v1398 = vmul.f32 %v1275, 1.442695
        %v1399 = vpow.pop %v1398
        %v1400 = vmul.f32 %v1276, 1.442695
        %v1401 = vpow.pop %v1400
        %v1402 = vmul.f32 %v1277, 1.442695
        %v1403 = vpow.pop %v1402
        %v1404 = vmul.f32 %v1278, 1.442695
        %v1405 = vpow.pop %v1404
        %v1406 = vmul.f32 %v1279, 1.442695
        %v1407 = vpow.pop %v1406
        %v1408 = vadd.f32 %v1281, %v1283
        %1409 = vadd.xlane.f32.xlu0 %v1408
        %v1410 = vpop.xlane.xlu0 %1409
        %v1411 = vadd.f32 %v1285, %v1287
        %1412 = vadd.xlane.f32.xlu0 %v1411
        %v1413 = vpop.xlane.xlu0 %1412
        %v1414 = vadd.f32 %v1289, %v1291
        %1415 = vadd.xlane.f32.xlu0 %v1414
        %v1416 = vpop.xlane.xlu0 %1415
        %v1417 = vadd.f32 %v1293, %v1295
        %1418 = vadd.xlane.f32.xlu0 %v1417
        %v1419 = vpop.xlane.xlu0 %1418
        %v1420 = vadd.f32 %v1297, %v1299
        %1421 = vadd.xlane.f32.xlu0 %v1420
        %v1422 = vpop.xlane.xlu0 %1421
        %v1423 = vadd.f32 %v1301, %v1303
        %1424 = vadd.xlane.f32.xlu0 %v1423
        %v1425 = vpop.xlane.xlu0 %1424
        %v1426 = vadd.f32 %v1305, %v1307
        %1427 = vadd.xlane.f32.xlu0 %v1426
        %v1428 = vpop.xlane.xlu0 %1427
        %v1429 = vadd.f32 %v1309, %v1311
        %1430 = vadd.xlane.f32.xlu0 %v1429
        %v1431 = vpop.xlane.xlu0 %1430
        %v1432 = vadd.f32 %v1313, %v1315
        %1433 = vadd.xlane.f32.xlu0 %v1432
        %v1434 = vpop.xlane.xlu0 %1433
        %v1435 = vadd.f32 %v1317, %v1319
        %1436 = vadd.xlane.f32.xlu0 %v1435
        %v1437 = vpop.xlane.xlu0 %1436
        %v1438 = vadd.f32 %v1321, %v1323
        %1439 = vadd.xlane.f32.xlu0 %v1438
        %v1440 = vpop.xlane.xlu0 %1439
        %v1441 = vadd.f32 %v1325, %v1327
        %1442 = vadd.xlane.f32.xlu0 %v1441
        %v1443 = vpop.xlane.xlu0 %1442
        %v1444 = vadd.f32 %v1329, %v1331
        %1445 = vadd.xlane.f32.xlu0 %v1444
        %v1446 = vpop.xlane.xlu0 %1445
        %v1447 = vadd.f32 %v1333, %v1335
        %1448 = vadd.xlane.f32.xlu0 %v1447
        %v1449 = vpop.xlane.xlu0 %1448
        %v1450 = vadd.f32 %v1337, %v1339
        %1451 = vadd.xlane.f32.xlu0 %v1450
        %v1452 = vpop.xlane.xlu0 %1451
        %v1453 = vadd.f32 %v1341, %v1343
        %1454 = vadd.xlane.f32.xlu0 %v1453
        %v1455 = vpop.xlane.xlu0 %1454
        %v1456 = vadd.f32 %v1345, %v1347
        %1457 = vadd.xlane.f32.xlu0 %v1456
        %v1458 = vpop.xlane.xlu0 %1457
        %v1459 = vadd.f32 %v1349, %v1351
        %1460 = vadd.xlane.f32.xlu0 %v1459
        %v1461 = vpop.xlane.xlu0 %1460
        %v1462 = vadd.f32 %v1353, %v1355
        %1463 = vadd.xlane.f32.xlu0 %v1462
        %v1464 = vpop.xlane.xlu0 %1463
        %v1465 = vadd.f32 %v1357, %v1359
        %1466 = vadd.xlane.f32.xlu0 %v1465
        %v1467 = vpop.xlane.xlu0 %1466
        %v1468 = vadd.f32 %v1361, %v1363
        %1469 = vadd.xlane.f32.xlu0 %v1468
        %v1470 = vpop.xlane.xlu0 %1469
        %v1471 = vadd.f32 %v1365, %v1367
        %1472 = vadd.xlane.f32.xlu0 %v1471
        %v1473 = vpop.xlane.xlu0 %1472
        %v1474 = vadd.f32 %v1369, %v1371
        %1475 = vadd.xlane.f32.xlu0 %v1474
        %v1476 = vpop.xlane.xlu0 %1475
        %v1477 = vadd.f32 %v1373, %v1375
        %1478 = vadd.xlane.f32.xlu0 %v1477
        %v1479 = vpop.xlane.xlu0 %1478
        %v1480 = vadd.f32 %v1377, %v1379
        %1481 = vadd.xlane.f32.xlu0 %v1480
        %v1482 = vpop.xlane.xlu0 %1481
        %v1483 = vadd.f32 %v1381, %v1383
        %1484 = vadd.xlane.f32.xlu0 %v1483
        %v1485 = vpop.xlane.xlu0 %1484
        %v1486 = vadd.f32 %v1385, %v1387
        %1487 = vadd.xlane.f32.xlu0 %v1486
        %v1488 = vpop.xlane.xlu0 %1487
        %v1489 = vadd.f32 %v1389, %v1391
        %1490 = vadd.xlane.f32.xlu0 %v1489
        %v1491 = vpop.xlane.xlu0 %1490
        %v1492 = vadd.f32 %v1393, %v1395
        %1493 = vadd.xlane.f32.xlu0 %v1492
        %v1494 = vpop.xlane.xlu0 %1493
        %v1495 = vadd.f32 %v1397, %v1399
        %1496 = vadd.xlane.f32.xlu0 %v1495
        %v1497 = vpop.xlane.xlu0 %1496
        %v1498 = vadd.f32 %v1401, %v1403
        %1499 = vadd.xlane.f32.xlu0 %v1498
        %v1500 = vpop.xlane.xlu0 %1499
        %v1501 = vadd.f32 %v1405, %v1407
        %1502 = vadd.xlane.f32.xlu0 %v1501
        %v1503 = vpop.xlane.xlu0 %1502
        %v1504 = vpack.c.bf16 %v1285, %v1281
        %v1505 = vpack.c.bf16 %v1287, %v1283
        %v1506 = vpack.c.bf16 %v1293, %v1289
        %v1507 = vpack.c.bf16 %v1295, %v1291
        %v1508 = vpack.c.bf16 %v1301, %v1297
        %v1509 = vpack.c.bf16 %v1303, %v1299
        %v1510 = vpack.c.bf16 %v1309, %v1305
        %v1511 = vpack.c.bf16 %v1311, %v1307
        %v1512 = vpack.c.bf16 %v1317, %v1313
        %v1513 = vpack.c.bf16 %v1319, %v1315
        %v1514 = vpack.c.bf16 %v1325, %v1321
        %v1515 = vpack.c.bf16 %v1327, %v1323
        %v1516 = vpack.c.bf16 %v1333, %v1329
        %v1517 = vpack.c.bf16 %v1335, %v1331
        %v1518 = vpack.c.bf16 %v1341, %v1337
        %v1519 = vpack.c.bf16 %v1343, %v1339
        %v1520 = vpack.c.bf16 %v1349, %v1345
        %v1521 = vpack.c.bf16 %v1351, %v1347
        %v1522 = vpack.c.bf16 %v1357, %v1353
        %v1523 = vpack.c.bf16 %v1359, %v1355
        %v1524 = vpack.c.bf16 %v1365, %v1361
        %v1525 = vpack.c.bf16 %v1367, %v1363
        %v1526 = vpack.c.bf16 %v1373, %v1369
        %v1527 = vpack.c.bf16 %v1375, %v1371
        %v1528 = vpack.c.bf16 %v1381, %v1377
        %v1529 = vpack.c.bf16 %v1383, %v1379
        %v1530 = vpack.c.bf16 %v1389, %v1385
        %v1531 = vpack.c.bf16 %v1391, %v1387
        %v1532 = vpack.c.bf16 %v1397, %v1393
        %v1533 = vpack.c.bf16 %v1399, %v1395
        %v1534 = vpack.c.bf16 %v1405, %v1401
        %v1535 = vpack.c.bf16 %v1407, %v1403
        %1552 = vrot.lane.b32.xlu0 %v815, 124
        %v1553 = vpop.permute.xlu0 %1552
        %1554 = vrot.lane.b32.xlu0 %v816, 124
        %v1555 = vpop.permute.xlu0 %1554
        %1556 = vrot.lane.b32.xlu0 %v817, 124
        %v1557 = vpop.permute.xlu0 %1556
        %1558 = vrot.lane.b32.xlu0 %v818, 124
        %v1559 = vpop.permute.xlu0 %1558
        %1560 = vrot.lane.b32.xlu0 %v819, 124
        %v1561 = vpop.permute.xlu0 %1560
        %1562 = vrot.lane.b32.xlu0 %v820, 124
        %v1563 = vpop.permute.xlu0 %1562
        %1564 = vrot.lane.b32.xlu0 %v821, 124
        %v1565 = vpop.permute.xlu0 %1564
        %1566 = vrot.lane.b32.xlu0 %v822, 124
        %v1567 = vpop.permute.xlu0 %1566
        %1568 = vrot.lane.b32.xlu0 %v823, 124
        %v1569 = vpop.permute.xlu0 %1568
        %1570 = vrot.lane.b32.xlu0 %v824, 124
        %v1571 = vpop.permute.xlu0 %1570
        %1572 = vrot.lane.b32.xlu0 %v825, 124
        %v1573 = vpop.permute.xlu0 %1572
        %1574 = vrot.lane.b32.xlu0 %v826, 124
        %v1575 = vpop.permute.xlu0 %1574
        %1576 = vrot.lane.b32.xlu0 %v827, 124
        %v1577 = vpop.permute.xlu0 %1576
        %1578 = vrot.lane.b32.xlu0 %v828, 124
        %v1579 = vpop.permute.xlu0 %1578
        %1580 = vrot.lane.b32.xlu0 %v829, 124
        %v1581 = vpop.permute.xlu0 %1580
        %1582 = vrot.lane.b32.xlu0 %v830, 124
        %v1583 = vpop.permute.xlu0 %1582
        %1600 = vmatprep.subr.bf16.mxu0 0
        %1601 = vmatpush1.bf16.msra.mxu0 %v1553
        %1602 = vmatprep.subr.bf16.mxu0 0
        %1603 = vmatpush1.bf16.msra.mxu0 %v1555
        %1604 = vmatprep.subr.bf16.mxu0 0
        %1605 = vmatpush1.bf16.msra.mxu0 %v1557
        %1606 = vmatprep.subr.bf16.mxu0 0
        %1607 = vmatpush1.bf16.msra.mxu0 %v1559
        %1608 = vmatprep.subr.bf16.mxu0 0
        %1609 = vmatpush1.bf16.msra.mxu0 %v1561
        %1610 = vmatprep.subr.bf16.mxu0 0
        %1611 = vmatpush1.bf16.msra.mxu0 %v1563
        %1612 = vmatprep.subr.bf16.mxu0 0
        %1613 = vmatpush1.bf16.msra.mxu0 %v1565
        %1614 = vmatprep.subr.bf16.mxu0 0
        %1615 = vmatpush1.bf16.msra.mxu0 %v1567
        %1616 = vmatprep.subr.bf16.mxu0 0
        %1617 = vmatpush1.bf16.msra.mxu0 %v1569
        %1618 = vmatprep.subr.bf16.mxu0 0
        %1619 = vmatpush1.bf16.msra.mxu0 %v1571
        %1620 = vmatprep.subr.bf16.mxu0 0
        %1621 = vmatpush1.bf16.msra.mxu0 %v1573
        %1622 = vmatprep.subr.bf16.mxu0 0
        %1623 = vmatpush1.bf16.msra.mxu0 %v1575
        %1624 = vmatprep.subr.bf16.mxu0 0
        %1625 = vmatpush1.bf16.msra.mxu0 %v1577
        %1626 = vmatprep.subr.bf16.mxu0 0
        %1627 = vmatpush1.bf16.msra.mxu0 %v1579
        %1628 = vmatprep.subr.bf16.mxu0 0
        %1629 = vmatpush1.bf16.msra.mxu0 %v1581
        %1630 = vmatprep.subr.bf16.mxu0 0
        %1631 = vmatpush1.bf16.msra.mxu0 %v1583
        %1632 = vmatprep.mubr.bf16.mxu0 %v1505
        %1633 = vmatmul.mubr.bf16.gmra.mrb[0].mxu0 %v1504
        %v1634 = vpop.f32.mrb[0].mxu0
        %v1635 = vadd.f32 0.0, %v1634
        %v1636 = vpop.f32.mrb[0].mxu0
        %v1637 = vpop.f32.mrb[0].mxu0
        %v1638 = vadd.f32 0.0, %v1637
        %v1639 = vpop.f32.mrb[0].mxu0
        %1640 = vmatprep.mubr.bf16.mxu0 %v1507
        %1641 = vmatmul.mubr.bf16.gmra.mrb[0].mxu0 %v1506
        %v1642 = vpop.f32.mrb[0].mxu0
        %v1643 = vadd.f32 0.0, %v1642
        %v1644 = vpop.f32.mrb[0].mxu0
        %v1645 = vpop.f32.mrb[0].mxu0
        %v1646 = vadd.f32 0.0, %v1645
        %v1647 = vpop.f32.mrb[0].mxu0
        %1648 = vmatprep.mubr.bf16.mxu0 %v1509
        %1649 = vmatmul.mubr.bf16.gmra.mrb[0].mxu0 %v1508
        %v1650 = vpop.f32.mrb[0].mxu0
        %v1651 = vadd.f32 0.0, %v1650
        %v1652 = vpop.f32.mrb[0].mxu0
        %v1653 = vpop.f32.mrb[0].mxu0
        %v1654 = vadd.f32 0.0, %v1653
        %v1655 = vpop.f32.mrb[0].mxu0
        %1656 = vmatprep.mubr.bf16.mxu0 %v1511
        %1657 = vmatmul.mubr.bf16.gmra.mrb[0].mxu0 %v1510
        %v1658 = vpop.f32.mrb[0].mxu0
        %v1659 = vadd.f32 0.0, %v1658
        %v1660 = vpop.f32.mrb[0].mxu0
        %v1661 = vpop.f32.mrb[0].mxu0
        %v1662 = vadd.f32 0.0, %v1661
        %v1663 = vpop.f32.mrb[0].mxu0
        %1664 = vmatprep.mubr.bf16.mxu0 %v1513
        %1665 = vmatmul.mubr.bf16.gmra.mrb[0].mxu0 %v1512
        %v1666 = vpop.f32.mrb[0].mxu0
        %v1667 = vadd.f32 0.0, %v1666
        %v1668 = vpop.f32.mrb[0].mxu0
        %v1669 = vpop.f32.mrb[0].mxu0
        %v1670 = vadd.f32 0.0, %v1669
        %v1671 = vpop.f32.mrb[0].mxu0
        %1672 = vmatprep.mubr.bf16.mxu0 %v1515
        %1673 = vmatmul.mubr.bf16.gmra.mrb[0].mxu0 %v1514
        %v1674 = vpop.f32.mrb[0].mxu0
        %v1675 = vadd.f32 0.0, %v1674
        %v1676 = vpop.f32.mrb[0].mxu0
        %v1677 = vpop.f32.mrb[0].mxu0
        %v1678 = vadd.f32 0.0, %v1677
        %v1679 = vpop.f32.mrb[0].mxu0
        %1680 = vmatprep.mubr.bf16.mxu0 %v1517
        %1681 = vmatmul.mubr.bf16.gmra.mrb[0].mxu0 %v1516
        %v1682 = vpop.f32.mrb[0].mxu0
        %v1683 = vadd.f32 0.0, %v1682
        %v1684 = vpop.f32.mrb[0].mxu0
        %v1685 = vpop.f32.mrb[0].mxu0
        %v1686 = vadd.f32 0.0, %v1685
        %v1687 = vpop.f32.mrb[0].mxu0
        %1688 = vmatprep.mubr.bf16.mxu0 %v1519
        %1689 = vmatmul.mubr.bf16.gmra.mrb[0].mxu0 %v1518
        %v1690 = vpop.f32.mrb[0].mxu0
        %v1691 = vadd.f32 0.0, %v1690
        %v1692 = vpop.f32.mrb[0].mxu0
        %v1693 = vpop.f32.mrb[0].mxu0
        %v1694 = vadd.f32 0.0, %v1693
        %v1695 = vpop.f32.mrb[0].mxu0
        %1696 = vmatprep.mubr.bf16.mxu0 %v1521
        %1697 = vmatmul.mubr.bf16.gmra.mrb[0].mxu0 %v1520
        %v1698 = vpop.f32.mrb[0].mxu0
        %v1699 = vadd.f32 0.0, %v1698
        %v1700 = vpop.f32.mrb[0].mxu0
        %v1701 = vpop.f32.mrb[0].mxu0
        %v1702 = vadd.f32 0.0, %v1701
        %v1703 = vpop.f32.mrb[0].mxu0
        %1704 = vmatprep.mubr.bf16.mxu0 %v1523
        %1705 = vmatmul.mubr.bf16.gmra.mrb[0].mxu0 %v1522
        %v1706 = vpop.f32.mrb[0].mxu0
        %v1707 = vadd.f32 0.0, %v1706
        %v1708 = vpop.f32.mrb[0].mxu0
        %v1709 = vpop.f32.mrb[0].mxu0
        %v1710 = vadd.f32 0.0, %v1709
        %v1711 = vpop.f32.mrb[0].mxu0
        %1712 = vmatprep.mubr.bf16.mxu0 %v1525
        %1713 = vmatmul.mubr.bf16.gmra.mrb[0].mxu0 %v1524
        %v1714 = vpop.f32.mrb[0].mxu0
        %v1715 = vadd.f32 0.0, %v1714
        %v1716 = vpop.f32.mrb[0].mxu0
        %v1717 = vpop.f32.mrb[0].mxu0
        %v1718 = vadd.f32 0.0, %v1717
        %v1719 = vpop.f32.mrb[0].mxu0
        %1720 = vmatprep.mubr.bf16.mxu0 %v1527
        %1721 = vmatmul.mubr.bf16.gmra.mrb[0].mxu0 %v1526
        %v1722 = vpop.f32.mrb[0].mxu0
        %v1723 = vadd.f32 0.0, %v1722
        %v1724 = vpop.f32.mrb[0].mxu0
        %v1725 = vpop.f32.mrb[0].mxu0
        %v1726 = vadd.f32 0.0, %v1725
        %v1727 = vpop.f32.mrb[0].mxu0
        %1728 = vmatprep.mubr.bf16.mxu0 %v1529
        %1729 = vmatmul.mubr.bf16.gmra.mrb[0].mxu0 %v1528
        %v1730 = vpop.f32.mrb[0].mxu0
        %v1731 = vadd.f32 0.0, %v1730
        %v1732 = vpop.f32.mrb[0].mxu0
        %v1733 = vpop.f32.mrb[0].mxu0
        %v1734 = vadd.f32 0.0, %v1733
        %v1735 = vpop.f32.mrb[0].mxu0
        %1736 = vmatprep.mubr.bf16.mxu0 %v1531
        %1737 = vmatmul.mubr.bf16.gmra.mrb[0].mxu0 %v1530
        %v1738 = vpop.f32.mrb[0].mxu0
        %v1739 = vadd.f32 0.0, %v1738
        %v1740 = vpop.f32.mrb[0].mxu0
        %v1741 = vpop.f32.mrb[0].mxu0
        %v1742 = vadd.f32 0.0, %v1741
        %v1743 = vpop.f32.mrb[0].mxu0
        %1744 = vmatprep.mubr.bf16.mxu0 %v1533
        %1745 = vmatmul.mubr.bf16.gmra.mrb[0].mxu0 %v1532
        %v1746 = vpop.f32.mrb[0].mxu0
        %v1747 = vadd.f32 0.0, %v1746
        %v1748 = vpop.f32.mrb[0].mxu0
        %v1749 = vpop.f32.mrb[0].mxu0
        %v1750 = vadd.f32 0.0, %v1749
        %v1751 = vpop.f32.mrb[0].mxu0
        %1752 = vmatprep.mubr.bf16.mxu0 %v1535
        %1753 = vmatmul.mubr.bf16.gmra.mrb[0].mxu0 %v1534
        %v1754 = vpop.f32.mrb[0].mxu0
        %v1755 = vadd.f32 0.0, %v1754
        %v1756 = vpop.f32.mrb[0].mxu0
        %v1757 = vpop.f32.mrb[0].mxu0
        %v1758 = vadd.f32 0.0, %v1757
        %v1759 = vpop.f32.mrb[0].mxu0
        %1760 = vdwg.mxu0
        %v1761 = vrcp.pop %v1410
        %v1762 = vrcp.pop %v1413
        %v1763 = vrcp.pop %v1416
        %v1764 = vrcp.pop %v1419
        %v1765 = vrcp.pop %v1422
        %v1766 = vrcp.pop %v1425
        %v1767 = vrcp.pop %v1428
        %v1768 = vrcp.pop %v1431
        %v1769 = vrcp.pop %v1434
        %v1770 = vrcp.pop %v1437
        %v1771 = vrcp.pop %v1440
        %v1772 = vrcp.pop %v1443
        %v1773 = vrcp.pop %v1446
        %v1774 = vrcp.pop %v1449
        %v1775 = vrcp.pop %v1452
        %v1776 = vrcp.pop %v1455
        %v1777 = vrcp.pop %v1458
        %v1778 = vrcp.pop %v1461
        %v1779 = vrcp.pop %v1464
        %v1780 = vrcp.pop %v1467
        %v1781 = vrcp.pop %v1470
        %v1782 = vrcp.pop %v1473
        %v1783 = vrcp.pop %v1476
        %v1784 = vrcp.pop %v1479
        %v1785 = vrcp.pop %v1482
        %v1786 = vrcp.pop %v1485
        %v1787 = vrcp.pop %v1488
        %v1788 = vrcp.pop %v1491
        %v1789 = vrcp.pop %v1494
        %v1790 = vrcp.pop %v1497
        %v1791 = vrcp.pop %v1500
        %v1792 = vrcp.pop %v1503
        %v1793 = vmul.f32 %v1635, %v1761
        %v1794 = vmul.f32 %v1638, %v1762
        %v1795 = vmul.f32 %v1643, %v1763
        %v1796 = vmul.f32 %v1646, %v1764
        %v1797 = vmul.f32 %v1651, %v1765
        %v1798 = vmul.f32 %v1654, %v1766
        %v1799 = vmul.f32 %v1659, %v1767
        %v1800 = vmul.f32 %v1662, %v1768
        %v1801 = vmul.f32 %v1667, %v1769
        %v1802 = vmul.f32 %v1670, %v1770
        %v1803 = vmul.f32 %v1675, %v1771
        %v1804 = vmul.f32 %v1678, %v1772
        %v1805 = vmul.f32 %v1683, %v1773
        %v1806 = vmul.f32 %v1686, %v1774
        %v1807 = vmul.f32 %v1691, %v1775
        %v1808 = vmul.f32 %v1694, %v1776
        %v1809 = vmul.f32 %v1699, %v1777
        %v1810 = vmul.f32 %v1702, %v1778
        %v1811 = vmul.f32 %v1707, %v1779
        %v1812 = vmul.f32 %v1710, %v1780
        %v1813 = vmul.f32 %v1715, %v1781
        %v1814 = vmul.f32 %v1718, %v1782
        %v1815 = vmul.f32 %v1723, %v1783
        %v1816 = vmul.f32 %v1726, %v1784
        %v1817 = vmul.f32 %v1731, %v1785
        %v1818 = vmul.f32 %v1734, %v1786
        %v1819 = vmul.f32 %v1739, %v1787
        %v1820 = vmul.f32 %v1742, %v1788
        %v1821 = vmul.f32 %v1747, %v1789
        %v1822 = vmul.f32 %v1750, %v1790
        %v1823 = vmul.f32 %v1755, %v1791
        %v1824 = vmul.f32 %v1758, %v1792
        %v1825 = vld [vmem:[%s5] sm:$0x3]
        %v1826 = vpack.c.bf16 %v1794, %v1793
        %v1827 = vpack.c.bf16 %v1796, %v1795
        %v1828 = vpack.c.bf16 %v1798, %v1797
        %v1829 = vpack.c.bf16 %v1800, %v1799
        %v1830 = vpack.c.bf16 %v1802, %v1801
        %v1831 = vpack.c.bf16 %v1804, %v1803
        %v1832 = vpack.c.bf16 %v1806, %v1805
        %v1833 = vpack.c.bf16 %v1808, %v1807
        %v1834 = vpack.c.bf16 %v1810, %v1809
        %v1835 = vpack.c.bf16 %v1812, %v1811
        %v1836 = vpack.c.bf16 %v1814, %v1813
        %v1837 = vpack.c.bf16 %v1816, %v1815
        %v1838 = vpack.c.bf16 %v1818, %v1817
        %v1839 = vpack.c.bf16 %v1820, %v1819
        %v1840 = vpack.c.bf16 %v1822, %v1821
        %v1841 = vpack.c.bf16 %v1824, %v1823
        %v1842 = vld [vmem:[%s6] sm:$0xf]
        %1844 = vset.pattern.permute.xlu0 0
        %1845 = vperm.xlu0 %1844, %v1842
        %v1846 = vpop.permute.xlu0 %1845
        %v1849 = vsel %vm413, %v1825, 0
        %v1852 = vsel %vm413, %v1826, 0
        %v1855 = vsel %vm413, %v1827, 0
        %v1858 = vsel %vm413, %v1828, 0
        %v1861 = vsel %vm413, %v1829, 0
        %v1864 = vsel %vm413, %v1830, 0
        %v1867 = vsel %vm413, %v1831, 0
        %v1870 = vsel %vm413, %v1832, 0
        %v1873 = vsel %vm413, %v1833, 0
        %v1876 = vsel %vm413, %v1834, 0
        %v1879 = vsel %vm413, %v1835, 0
        %v1882 = vsel %vm413, %v1836, 0
        %v1885 = vsel %vm413, %v1837, 0
        %v1888 = vsel %vm413, %v1838, 0
        %v1891 = vsel %vm413, %v1839, 0
        %v1894 = vsel %vm413, %v1840, 0
        %v1897 = vsel %vm413, %v1841, 0
        %1899 = vmatprep.subr.bf16.mxu0 0
        %1900 = vmatpush1.bf16.xpose.msra.mxu0 %v1852
        %1901 = vmatprep.subr.bf16.mxu0 0
        %1902 = vmatpush1.bf16.xpose.msra.mxu0 %v1855
        %1903 = vmatprep.subr.bf16.mxu0 0
        %1904 = vmatpush1.bf16.xpose.msra.mxu0 %v1858
        %1905 = vmatprep.subr.bf16.mxu0 0
        %1906 = vmatpush1.bf16.xpose.msra.mxu0 %v1861
        %1907 = vmatprep.subr.bf16.mxu0 0
        %1908 = vmatpush1.bf16.xpose.msra.mxu0 %v1864
        %1909 = vmatprep.subr.bf16.mxu0 0
        %1910 = vmatpush1.bf16.xpose.msra.mxu0 %v1867
        %1911 = vmatprep.subr.bf16.mxu0 0
        %1912 = vmatpush1.bf16.xpose.msra.mxu0 %v1870
        %1913 = vmatprep.subr.bf16.mxu0 0
        %1914 = vmatpush1.bf16.xpose.msra.mxu0 %v1873
        %1915 = vmatprep.subr.bf16.mxu0 0
        %1916 = vmatpush1.bf16.xpose.msra.mxu0 %v1876
        %1917 = vmatprep.subr.bf16.mxu0 0
        %1918 = vmatpush1.bf16.xpose.msra.mxu0 %v1879
        %1919 = vmatprep.subr.bf16.mxu0 0
        %1920 = vmatpush1.bf16.xpose.msra.mxu0 %v1882
        %1921 = vmatprep.subr.bf16.mxu0 0
        %1922 = vmatpush1.bf16.xpose.msra.mxu0 %v1885
        %1923 = vmatprep.subr.bf16.mxu0 0
        %1924 = vmatpush1.bf16.xpose.msra.mxu0 %v1888
        %1925 = vmatprep.subr.bf16.mxu0 0
        %1926 = vmatpush1.bf16.xpose.msra.mxu0 %v1891
        %1927 = vmatprep.subr.bf16.mxu0 0
        %1928 = vmatpush1.bf16.xpose.msra.mxu0 %v1894
        %1929 = vmatprep.subr.bf16.mxu0 0
        %1930 = vmatpush1.bf16.xpose.msra.mxu0 %v1897
        %1931 = vmatprep.mubr.bf16.mxu0 0
        %1932 = vmatmul.mubr.bf16.gmra.mrb[0].mxu0 %v1849
        %v1933 = vpop.f32.mrb[0].mxu0
        %v1934 = vadd.f32 %v1846, %v1933
        %v1935 = vpop.f32.mrb[0].mxu0
        %v1936 = vadd.f32 %v1846, %v1935
        %v1937 = vpop.f32.mrb[0].mxu0
        %v1938 = vpop.f32.mrb[0].mxu0
        %1939 = vdwg.mxu0
        %v1942 = vcombine.low %v1934, %v1936
        %1944 = vst [vmem:[%s285] sm:$0xff] %v1942
        %s1945 = sand.u32 %s195, 1
        %s1946 = scalar_lea.sflag [#allocation3], %s1945
        %s1947 = sand.u32 %s195, 1
        %s1948 = smul.addr %s1947, 8
        %s1949 = scalar_lea.vmem [#allocation2], %s1948
        // Predicated region
        $region49: #{tpu_custom_call.1} parent=47 // pred_check
          %p1950 = pneg %p205
        $region50: #{tpu_custom_call.1} parent=47 // pred_check_branch
          %1952 = sbr.rel (%p1950) target = $region52
        $region51: #{tpu_custom_call.1} parent=47 // pred_region
          %s1953 = smul.u32 2, %s26
          %s1955 = ssub.s32 128, 128
          %1956 = vsyncadd %s1946, %s1955
          %s1957 = smul.addr %s25, 2
          %s1958 = sadd.s32 %s1953, %s1957
          %s1959 = smul.addr %s1958, 64
          %s1960 = scalar_lea.hbm %s7, %s1959
          %s1962 = sshll.u32 %s1949, 4
          %s1963 = int_to_ptr.vmem [resolvable:$true] %s1962
          %1965 = dma.vmem_to_hbm [thread:$0]  %s1963, 128, %s1960, %s1946
        $region52: #{tpu_custom_call.1} parent=47 // pred_fallthru
          _
      $region48: #{tpu_custom_call.1} parent=5 // pred_fallthru
        _
      %p1966 = scmp.le.s32.totalorder 2, %s16
      // Predicated region
      $region53: #{tpu_custom_call.1} parent=5 // pred_check
        %p1967 = pneg %p1966
      $region54: #{tpu_custom_call.1} parent=5 // pred_check_branch
        %1969 = sbr.rel (%p1967) target = $region56
      $region55: #{tpu_custom_call.1} parent=5 // pred_region
        %s1970 = ssub.s32 %s16, 2
        // Predicated region
        $region57: #{tpu_custom_call.1} parent=55 // pred_check
          %p1971 = pneg %p211
        $region58: #{tpu_custom_call.1} parent=55 // pred_check_branch
          %1973 = sbr.rel (%p1971) target = $region60
        $region59: #{tpu_custom_call.1} parent=55 // pred_region
          %s1974 = sand.u32 %s196, 1
          %s1975 = scalar_lea.sflag [#allocation3], %s1974
          %s1976 = sand.u32 %s196, 1
          %s1977 = smul.addr %s1976, 8
          %s1978 = scalar_lea.vmem [#allocation2], %s1977
          %1979 = dma.done %s1975, 128
        $region60: #{tpu_custom_call.1} parent=55 // pred_fallthru
          _
      $region56: #{tpu_custom_call.1} parent=5 // pred_fallthru
        _
    $region6: #{tpu_custom_call.1} parent=1 // loop_footer
      %s20 = sadd.s32 1, %s16
    $region7: #{tpu_custom_call.1} parent=1 // loop_footer_branch
      %15 = sbr.rel target = $region3
    $region8: #{tpu_custom_call.1} parent=1 // loop_exit
      _
    %1980 = vsyncpa [#allocation3], 1
    %s1981 = scalar_lea.sflag [#allocation3], 1
    %1982 = vsyncpa %s1981, 1

</llo_original>
